<compile_context>
chip_gen: v5e
topology: v5e:2x2
jax: 0.10.0
libtpu: 0.0.40
codegen_flags: <defaults>
</compile_context>

<pallas_src>
import functools

import jax
import jax.numpy as jnp
import numpy as np
from jax import lax
from jax.experimental import pallas as pl
from jax.experimental.pallas import tpu as pltpu

EPS = 1e-5
LANE = 128


def _ceil_to(a, b):
    return ((a + b - 1) // b) * b


def _nbytes(a):
    return int(np.prod(a.shape)) * np.dtype(a.dtype).itemsize


def _vmem_limit_bytes(per_step_bytes):
    """Generation-aware VMEM limit: double-buffered blocks + headroom, clamped to HW capacity."""
    try:
        cap = int(pltpu.get_tpu_info().vmem_capacity_bytes)
    except Exception:
        cap = 64 * 1024 * 1024                      # assume the smallest (v7x per-TC) capacity
    want = int(2.5 * per_step_bytes) + (4 << 20)
    return max(8 << 20, min(want, int(cap * 0.85)))


# --------------------------------------------------------------------------
# Kernel bodies (each runs on one sample's rows per grid step)
# --------------------------------------------------------------------------
def _im2col_same(h_bf16, lout, ks, pad, c):
    """Zero-pad rows and fold taps into the lane (contraction) dim, all in bf16."""
    rpad = ks - 1 - pad
    pieces = []
    if pad > 0:
        pieces.append(jnp.zeros((pad, c), jnp.bfloat16))
    pieces.append(h_bf16)
    if rpad > 0:
        pieces.append(jnp.zeros((rpad, c), jnp.bfloat16))
    hp = pieces[0] if len(pieces) == 1 else jnp.concatenate(pieces, axis=0)
    if ks == 1:
        return hp[0:lout, :]
    # NOTE: the row-offset slices are sublane-misaligned relayout copies; accepted as part of
    # the fused-K im2col budget (see review).
    return jnp.concatenate([hp[k:k + lout, :] for k in range(ks)], axis=-1)


def _write_y_and_stats(y, y_ref, st_ref, lout, c):
    y_ref[...] = y.reshape(1, lout, c)
    st = jnp.concatenate([jnp.sum(y, axis=0, keepdims=True),
                          jnp.sum(y * y, axis=0, keepdims=True)], axis=0)
    st_ref[...] = st.reshape(1, 2, c)
    # TODO(synk): if a bundle profile shows VALU-bound, compute these column moments with an
    # MXU ones(1, M) @ [y, y*y] matmul instead of VPU reductions.


def _make_conv_stats_kernel(lout, k_in, c_out):
    """conv_1: pre-built im2col block @ weights, plus BN stats."""
    def kernel(a_ref, w_ref, b_ref, y_ref, st_ref):
        a = a_ref[...].reshape(lout, k_in)                      # bf16
        y = jnp.dot(a, w_ref[...], preferred_element_type=jnp.float32) + b_ref[...]
        _write_y_and_stats(y, y_ref, st_ref, lout, c_out)
    return kernel


def _make_bn_relu_conv_stats_kernel(lout, ks, pad, c):
    """relu(BN(prev conv output)) -> stride-1 'same' conv -> raw output + BN stats."""
    def kernel(y_prev_ref, sc_ref, sh_ref, w_ref, b_ref, y_ref, st_ref):
        yp = y_prev_ref[...].reshape(lout, c)                   # f32 raw conv output
        h = jnp.maximum(yp * sc_ref[...] + sh_ref[...], 0.0).astype(jnp.bfloat16)
        cols = _im2col_same(h, lout, ks, pad, c)
        y = jnp.dot(cols, w_ref[...], preferred_element_type=jnp.float32) + b_ref[...]
        _write_y_and_stats(y, y_ref, st_ref, lout, c)
    return kernel


def _make_residual_conv_stats_kernel(lout, ks, pad, c, cin_p, s_res, req_rescale):
    """conv_out_1 = BN2(y2); residual = relu(conv_out_1 + rescale(maxpool(x)));
       then conv_4(residual) raw output + BN stats.  Emits residual for the final add."""
    def body(y2_ref, sc_ref, sh_ref, res_ref, wr_ref, br_ref, w4_ref, b4_ref,
             r_ref, y_ref, st_ref):
        y2 = y2_ref[...].reshape(lout, c)
        conv_out_1 = y2 * sc_ref[...] + sh_ref[...]
        res = res_ref[...].reshape(s_res, lout, cin_p)          # bf16, phases on leading axis
        p = res[0]
        for j in range(1, s_res):                               # MaxPool1d(stride, stride)
            p = jnp.maximum(p, res[j])
        if req_rescale:
            r2 = jnp.dot(p, wr_ref[...], preferred_element_type=jnp.float32) + br_ref[...]
        else:
            r2 = p.astype(jnp.float32)                          # cin_p == c here
        residual = jnp.maximum(conv_out_1 + r2, 0.0)
        r_ref[...] = residual.reshape(1, lout, c)
        cols = _im2col_same(residual.astype(jnp.bfloat16), lout, ks, pad, c)
        y = jnp.dot(cols, w4_ref[...], preferred_element_type=jnp.float32) + b4_ref[...]
        _write_y_and_stats(y, y_ref, st_ref, lout, c)

    if req_rescale:
        def kernel(y2_ref, sc_ref, sh_ref, res_ref, wr_ref, br_ref, w4_ref, b4_ref,
                   r_ref, y_ref, st_ref):
            body(y2_ref, sc_ref, sh_ref, res_ref, wr_ref, br_ref, w4_ref, b4_ref,
                 r_ref, y_ref, st_ref)
    else:
        def kernel(y2_ref, sc_ref, sh_ref, res_ref, w4_ref, b4_ref,
                   r_ref, y_ref, st_ref):
            body(y2_ref, sc_ref, sh_ref, res_ref, None, None, w4_ref, b4_ref,
                 r_ref, y_ref, st_ref)
    return kernel


def _make_final_kernel(lout, c):
    """output = relu(BN3(y3) + residual)."""
    def kernel(y3_ref, sc_ref, sh_ref, r_ref, out_ref):
        y3 = y3_ref[...].reshape(lout, c)
        out = jnp.maximum(y3 * sc_ref[...] + sh_ref[...] + r_ref[...].reshape(lout, c), 0.0)
        out_ref[...] = out.reshape(1, lout, c)
    return kernel


# --------------------------------------------------------------------------
# Generic staged pallas_call runner (grid over batch, weights resident)
# --------------------------------------------------------------------------
def _pallas_stage(kernel, n, inputs, out_shapes, flops=0):
    """inputs: list of (array, blocked_on_batch: bool). Outputs are all blocked on axis 0."""
    in_specs, per_step, bytes_accessed = [], 0, 0
    for arr, blocked in inputs:
        nd = arr.ndim
        if blocked:
            in_specs.append(pl.BlockSpec((1,) + tuple(arr.shape[1:]),
                                         lambda i, _nd=nd: (i,) + (0,) * (_nd - 1)))
            per_step += 2 * (_nbytes(arr) // n)                 # double buffered
        else:
            in_specs.append(pl.BlockSpec(tuple(arr.shape),
                                         lambda i, _nd=nd: (0,) * _nd))
            per_step += _nbytes(arr)                            # resident
        bytes_accessed += _nbytes(arr)

    out_structs, out_specs = [], []
    for shape, dtype in out_shapes:
        out_structs.append(jax.ShapeDtypeStruct(shape, dtype))
        out_specs.append(pl.BlockSpec((1,) + tuple(shape[1:]),
                                      lambda i, _nd=len(shape): (i,) + (0,) * (_nd - 1)))
        nb = int(np.prod(shape)) * np.dtype(dtype).itemsize
        per_step += 2 * (nb // n)
        bytes_accessed += nb

    single = len(out_structs) == 1
    return pl.pallas_call(
        kernel,
        grid=(n,),
        in_specs=in_specs,
        out_specs=out_specs[0] if single else tuple(out_specs),
        out_shape=out_structs[0] if single else tuple(out_structs),
        compiler_params=pltpu.CompilerParams(
            dimension_semantics=("parallel",),                  # megacore on v7x; no-op on v5e/v6e
            vmem_limit_bytes=_vmem_limit_bytes(per_step)),
        cost_estimate=pl.CostEstimate(flops=int(flops), transcendentals=0,
                                      bytes_accessed=int(bytes_accessed)),
    )(*[a for a, _ in inputs])


def _bn_affine(stats, g, be, m_rows, c, c_p):
    """Fold training-mode BatchNorm1d into y*scale + shift from summed (sum, sum^2) stats."""
    s = jnp.sum(stats, axis=0)                                  # (2, c_p) f32
    mean = s[0] / m_rows
    # TODO(synk): E[x^2]-E[x]^2 is cancellation-prone for large-mean activations; switch to a
    # shifted/two-pass accumulation if real data needs it.
    var = jnp.maximum(s[1] / m_rows - mean * mean, 0.0)
    g_p = jnp.pad(g.astype(jnp.float32), (0, c_p - c))
    be_p = jnp.pad(be.astype(jnp.float32), (0, c_p - c))
    scale = g_p * lax.rsqrt(var + EPS)
    shift = be_p - mean * scale
    return scale.reshape(1, c_p), shift.reshape(1, c_p)


# --------------------------------------------------------------------------
# Forward wrapper (layout glue + staged pallas_calls)
# --------------------------------------------------------------------------
def res_conv_forward(x_ncl, params, *, ks, stride):
    """Forward of PyTorch `res_conv`. x_ncl: (N, in_ch, L) float32, NCL layout."""
    n, in_ch, length = x_ncl.shape
    out_ch = params['w1'].shape[0]
    assert ks % 2 == 1, "res_conv stride-1 convs only preserve length for odd ks"
    pad = (ks - 1) // 2
    lout = (length + 2 * pad - ks) // stride + 1
    req_rescale = in_ch != out_ch
    req_downsample = stride != 1

    cin_p = _ceil_to(in_ch, LANE)
    cout_p = _ceil_to(out_ch, LANE)
    m_rows = n * lout
    bf16 = jnp.bfloat16

    x = jnp.transpose(x_ncl, (0, 2, 1)).astype(jnp.float32)     # (N, L, Cin)

    # ---- conv_1 im2col (strided), K folded into lanes ----
    xpad = jnp.pad(x, ((0, 0), (pad, pad), (0, 0)))
    taps = [xpad[:, k:k + (lout - 1) * stride + 1:stride, :] for k in range(ks)]
    if ks * in_ch <= LANE:
        # small-channel path: compact pack, single pad to one 128-lane block (K = 128)
        k1 = LANE
        a1 = jnp.concatenate(taps, axis=-1)                     # (N, lout, ks*Cin)
        a1 = jnp.pad(a1, ((0, 0), (0, 0), (0, k1 - ks * in_ch)))
        w1 = jnp.transpose(params['w1'], (2, 1, 0)).reshape(ks * in_ch, out_ch)
        w1 = jnp.pad(w1, ((0, k1 - ks * in_ch), (0, cout_p - out_ch)))
    else:
        # large-channel path: per-tap lane padding (K = ks*cin_p), fused contraction.
        # TODO(synk): for very large Cin*L fold stride phases into lanes instead (avoids the
        # ks x HBM duplication of the conv_1 input).
        k1 = ks * cin_p
        taps = [jnp.pad(t, ((0, 0), (0, 0), (0, cin_p - in_ch))) for t in taps]
        a1 = jnp.concatenate(taps, axis=-1)
        w1 = jnp.transpose(params['w1'], (2, 1, 0))
        w1 = jnp.pad(w1, ((0, 0), (0, cin_p - in_ch), (0, cout_p - out_ch))).reshape(k1, cout_p)
    a1 = a1.astype(bf16)
    w1 = w1.astype(bf16)

    def _row(v):
        return jnp.pad(v.astype(jnp.float32), (0, cout_p - v.shape[0])).reshape(1, cout_p)

    def _w_same(w):                                             # (Cout, Cout, ks) -> (ks*cout_p, cout_p)
        wt = jnp.transpose(w, (2, 1, 0)).astype(jnp.float32)
        wt = jnp.pad(wt, ((0, 0), (0, cout_p - w.shape[1]), (0, cout_p - w.shape[0])))
        return wt.reshape(ks * cout_p, cout_p).astype(bf16)

    # ---- residual input: bf16, MaxPool phases folded into a leading length-`stride` axis ----
    if req_downsample:
        rx = x
        if length % 2 != 0:                                     # matches F.pad(residual, [0, 1])
            rx = jnp.pad(rx, ((0, 0), (0, 1), (0, 0)))
        lpool = rx.shape[1] // stride
        assert lpool == lout, "residual / conv_1 output length mismatch"
        rx = rx[:, :lpool * stride, :].reshape(n, lpool, stride, in_ch)
        rx = jnp.transpose(rx, (0, 2, 1, 3))                    # (N, stride, lout, Cin)
        s_res = stride
    else:
        rx = x.reshape(n, 1, length, in_ch)
        s_res = 1
    res_in = jnp.pad(rx, ((0, 0), (0, 0), (0, 0), (0, cin_p - in_ch))).astype(bf16)

    b1 = _row(params['b1'])
    w2, b2 = _w_same(params['w2']), _row(params['b2'])
    w3, b3 = _w_same(params['w3']), _row(params['b3'])
    w4, b4 = _w_same(params['w4']), _row(params['b4'])
    if req_rescale:
        wr = jnp.transpose(params['wr'][:, :, 0], (1, 0))
        wr = jnp.pad(wr, ((0, cin_p - in_ch), (0, cout_p - out_ch))).astype(bf16)
        br = _row(params['br'])

    y_shape = ((n, lout, cout_p), jnp.float32)
    st_shape = ((n, 2, cout_p), jnp.float32)
    conv_flops = 2 * m_rows * (ks * cout_p) * cout_p

    # Stage 1: conv_1 (single MXU matmul per sample) + BN1 stats
    y1, st1 = _pallas_stage(
        _make_conv_stats_kernel(lout, k1, cout_p), n,
        [(a1, True), (w1, False), (b1, False)],
        [y_shape, st_shape],
        flops=2 * m_rows * k1 * cout_p)
    sc1, sh1 = _bn_affine(st1, params['g1'], params['be1'], m_rows, out_ch, cout_p)

    # Stage 2: relu(BN1) -> conv_2 + BN2 stats
    y2, st2 = _pallas_stage(
        _make_bn_relu_conv_stats_kernel(lout, ks, pad, cout_p), n,
        [(y1, True), (sc1, False), (sh1, False), (w2, False), (b2, False)],
        [y_shape, st_shape],
        flops=conv_flops)
    sc2, sh2 = _bn_affine(st2, params['g2'], params['be2'], m_rows, out_ch, cout_p)

    # Stage 3: residual = relu(BN2(y2) + rescale(maxpool(x))); conv_4(residual) + BN4 stats
    stage3_in = [(y2, True), (sc2, False), (sh2, False), (res_in, True)]
    if req_rescale:
        stage3_in += [(wr, False), (br, False)]
    stage3_in += [(w4, False), (b4, False)]
    resid, y4, st4 = _pallas_stage(
        _make_residual_conv_stats_kernel(lout, ks, pad, cout_p, cin_p, s_res, req_rescale),
        n, stage3_in,
        [y_shape, y_shape, st_shape],
        flops=conv_flops + (2 * m_rows * cin_p * cout_p if req_rescale else 0))
    sc4, sh4 = _bn_affine(st4, params['g4'], params['be4'], m_rows, out_ch, cout_p)

    # Stage 4: relu(BN4) -> conv_3 + BN3 stats
    y3, st3 = _pallas_stage(
        _make_bn_relu_conv_stats_kernel(lout, ks, pad, cout_p), n,
        [(y4, True), (sc4, False), (sh4, False), (w3, False), (b3, False)],
        [y_shape, st_shape],
        flops=conv_flops)
    sc3, sh3 = _bn_affine(st3, params['g3'], params['be3'], m_rows, out_ch, cout_p)

    # Stage 5: output = relu(BN3(y3) + residual)
    out = _pallas_stage(
        _make_final_kernel(lout, cout_p), n,
        [(y3, True), (sc3, False), (sh3, False), (resid, True)],
        [y_shape],
        flops=3 * m_rows * cout_p)

    return jnp.transpose(out[:, :, :out_ch], (0, 2, 1))         # back to NCL, f32


# --------------------------------------------------------------------------
# Deterministic parameter init (shapes per res_conv.__init__, PyTorch layout)
# --------------------------------------------------------------------------
def init_params(key, in_ch, out_ch, ks):
    keys = jax.random.split(key, 10)

    def conv_w(k, co, ci, kk):
        bound = 1.0 / np.sqrt(ci * kk)
        return jax.random.uniform(k, (co, ci, kk), jnp.float32, -bound, bound)

    def conv_b(k, co, ci, kk):
        bound = 1.0 / np.sqrt(ci * kk)
        return jax.random.uniform(k, (co,), jnp.float32, -bound, bound)

    p = {
        'w1': conv_w(keys[0], out_ch, in_ch, ks),  'b1': conv_b(keys[1], out_ch, in_ch, ks),
        'w2': conv_w(keys[2], out_ch, out_ch, ks), 'b2': conv_b(keys[3], out_ch, out_ch, ks),
        'w3': conv_w(keys[4], out_ch, out_ch, ks), 'b3': conv_b(keys[5], out_ch, out_ch, ks),
        'w4': conv_w(keys[6], out_ch, out_ch, ks), 'b4': conv_b(keys[7], out_ch, out_ch, ks),
        'wr': conv_w(keys[8], out_ch, in_ch, 1),   'br': conv_b(keys[9], out_ch, in_ch, 1),
    }
    for i in (1, 2, 3, 4):                  # fresh BatchNorm1d: gamma=1, beta=0
        p[f'g{i}'] = jnp.ones((out_ch,), jnp.float32)
        p[f'be{i}'] = jnp.zeros((out_ch,), jnp.float32)
    return p


# --------------------------------------------------------------------------
# Pure-JAX reference (mirrors the PyTorch forward, NCL layout) for validation
# --------------------------------------------------------------------------
def _conv1d_ref(x, w, b, stride, pad):
    y = lax.conv_general_dilated(x, w, window_strides=(stride,), padding=((pad, pad),),
                                 dimension_numbers=('NCH', 'OIH', 'NCH'))
    return y + b[None, :, None]


def _bn_ref(y, g, be):
    mean = jnp.mean(y, axis=(0, 2), keepdims=True)
    var = jnp.mean(jnp.square(y - mean), axis=(0, 2), keepdims=True)
    return (y - mean) / jnp.sqrt(var + EPS) * g[None, :, None] + be[None, :, None]


def forward_ref(x, p, *, ks, stride, in_ch, out_ch):
    pad = (ks - 1) // 2
    relu = lambda t: jnp.maximum(t, 0.0)
    h = relu(_bn_ref(_conv1d_ref(x, p['w1'], p['b1'], stride, pad), p['g1'], p['be1']))
    conv_out_1 = _bn_ref(_conv1d_ref(h, p['w2'], p['b2'], 1, pad), p['g2'], p['be2'])
    residual = x
    if stride != 1:
        if x.shape[-1] % 2 != 0:
            residual = jnp.pad(residual, ((0, 0), (0, 0), (0, 1)))
        n, c, lr = residual.shape
        lp = lr // stride
        residual = jnp.max(residual[:, :, :lp * stride].reshape(n, c, lp, stride), axis=-1)
    if in_ch != out_ch:
        residual = _conv1d_ref(residual, p['wr'], p['br'], 1, 0)
    residual = relu(conv_out_1 + residual)
    h2 = relu(_bn_ref(_conv1d_ref(residual, p['w4'], p['b4'], 1, pad), p['g4'], p['be4']))
    conv_out_2 = _bn_ref(_conv1d_ref(h2, p['w3'], p['b3'], 1, pad), p['g3'], p['be3'])
    return relu(conv_out_2 + residual)


if __name__ == "__main__":
    in_ch, out_ch, ks, stride = 4, 8, 3, 2          # exercises downsample + rescale
    N, L = 2, 16

    key = jax.random.PRNGKey(0)
    kx, kp = jax.random.split(key)
    x = jax.random.normal(kx, (N, in_ch, L), jnp.float32)
    params = init_params(kp, in_ch, out_ch, ks)

    fwd = jax.jit(functools.partial(res_conv_forward, ks=ks, stride=stride))
    out = jax.block_until_ready(fwd(x, params))

    ref = forward_ref(x, params, ks=ks, stride=stride, in_ch=in_ch, out_ch=out_ch)
    # Tolerance accounts for bf16 MXU operands (f32 accumulation) vs the pure-f32 reference.
    np.testing.assert_allclose(np.asarray(out), np.asarray(ref), rtol=3e-2, atol=3e-2)
    print("KERNEL_OK")
</pallas_src>

<mosaic_0001>
module attributes {stable_mosaic.version = 11 : i64} {
  func.func @kernel(%arg0: i32, %arg1: memref<1x8x128xbf16, #tpu.memory_space<vmem>>, %arg2: memref<128x128xbf16, #tpu.memory_space<vmem>>, %arg3: memref<1x128xf32, #tpu.memory_space<vmem>>, %arg4: memref<1x8x128xf32, #tpu.memory_space<vmem>>, %arg5: memref<1x2x128xf32, #tpu.memory_space<vmem>>) attributes {dimension_semantics = [#tpu.dimension_semantics<parallel>], iteration_bounds = array<i64: 2>, scalar_prefetch = 0 : i64, scratch_operands = 0 : i64, tpu.core_type = #tpu.core_type<tc>, window_params = [{transform_indices = @transform_0, window_bounds = array<i64: 1, 8, 128>}, {pipeline_mode = #tpu.pipeline_mode<synchronous>, transform_indices = @transform_1, window_bounds = array<i64: 128, 128>}, {pipeline_mode = #tpu.pipeline_mode<synchronous>, transform_indices = @transform_2, window_bounds = array<i64: 1, 128>}, {transform_indices = @transform_3, window_bounds = array<i64: 1, 8, 128>}, {transform_indices = @transform_4, window_bounds = array<i64: 1, 2, 128>}]} {
    %c0 = arith.constant 0 : index
    %c0_0 = arith.constant 0 : index
    %c0_1 = arith.constant 0 : index
    %0 = vector.load %arg1[%c0, %c0_0, %c0_1] : memref<1x8x128xbf16, #tpu.memory_space<vmem>>, vector<1x8x128xbf16>
    %1 = vector.shape_cast %0 : vector<1x8x128xbf16> to vector<8x128xbf16>
    %c0_2 = arith.constant 0 : index
    %c0_3 = arith.constant 0 : index
    %2 = vector.load %arg2[%c0_2, %c0_3] : memref<128x128xbf16, #tpu.memory_space<vmem>>, vector<128x128xbf16>
    %cst = arith.constant dense<0.000000e+00> : vector<8x128xf32>
    %3 = tpu.matmul %1, %2, %cst {dimension_numbers = #tpu.dot_dimension_numbers<[1], [0], [0], [1], [0, 0, 1, 1], [], []>} : vector<8x128xbf16>, vector<128x128xbf16>, vector<8x128xf32> -> vector<8x128xf32>
    %c0_4 = arith.constant 0 : index
    %c0_5 = arith.constant 0 : index
    %4 = vector.load %arg3[%c0_4, %c0_5] : memref<1x128xf32, #tpu.memory_space<vmem>>, vector<1x128xf32>
    %5 = vector.broadcast %4 : vector<1x128xf32> to vector<8x128xf32>
    %6 = arith.addf %3, %5 : vector<8x128xf32>
    %7 = vector.shape_cast %6 : vector<8x128xf32> to vector<1x8x128xf32>
    %c0_6 = arith.constant 0 : index
    %c0_7 = arith.constant 0 : index
    %c0_8 = arith.constant 0 : index
    %8 = vector.load %arg4[%c0_6, %c0_7, %c0_8] : memref<1x8x128xf32, #tpu.memory_space<vmem>>, vector<1x8x128xf32>
    tpu.vector_store %arg4[%c0_6, %c0_7, %c0_8], %7 {strides = array<i32>} : memref<1x8x128xf32, #tpu.memory_space<vmem>>, vector<1x8x128xf32>,
    %cst_9 = arith.constant dense<0.000000e+00> : vector<128xf32>
    %9 = vector.multi_reduction <add>, %6, %cst_9 [0] : vector<8x128xf32> to vector<128xf32>
    %10 = vector.shape_cast %9 : vector<128xf32> to vector<1x128xf32>
    %11 = arith.mulf %6, %6 : vector<8x128xf32>
    %cst_10 = arith.constant dense<0.000000e+00> : vector<128xf32>
    %12 = vector.multi_reduction <add>, %11, %cst_10 [0] : vector<8x128xf32> to vector<128xf32>
    %13 = vector.shape_cast %12 : vector<128xf32> to vector<1x128xf32>
    %14 = tpu.concatenate %10, %13 in 0 : vector<1x128xf32>, vector<1x128xf32> -> vector<2x128xf32>
    %15 = vector.shape_cast %14 : vector<2x128xf32> to vector<1x2x128xf32>
    %c0_11 = arith.constant 0 : index
    %c0_12 = arith.constant 0 : index
    %c0_13 = arith.constant 0 : index
    %16 = vector.load %arg5[%c0_11, %c0_12, %c0_13] : memref<1x2x128xf32, #tpu.memory_space<vmem>>, vector<1x2x128xf32>
    tpu.vector_store %arg5[%c0_11, %c0_12, %c0_13], %15 {strides = array<i32>} : memref<1x2x128xf32, #tpu.memory_space<vmem>>, vector<1x2x128xf32>,
    return
  }
  func.func @transform_0(%arg0: i32) -> (i32, i32, i32) {
    %c0_i32 = arith.constant 0 : i32
    %c0_i32_0 = arith.constant 0 : i32
    %c0_i32_1 = arith.constant 0 : i32
    return %arg0, %c0_i32, %c0_i32_0 : i32, i32, i32
  }
  func.func @transform_1(%arg0: i32) -> (i32, i32) {
    %c0_i32 = arith.constant 0 : i32
    %c0_i32_0 = arith.constant 0 : i32
    %c0_i32_1 = arith.constant 0 : i32
    return %c0_i32, %c0_i32_0 : i32, i32
  }
  func.func @transform_2(%arg0: i32) -> (i32, i32) {
    %c0_i32 = arith.constant 0 : i32
    %c0_i32_0 = arith.constant 0 : i32
    %c0_i32_1 = arith.constant 0 : i32
    return %c0_i32, %c0_i32_0 : i32, i32
  }
  func.func @transform_3(%arg0: i32) -> (i32, i32, i32) {
    %c0_i32 = arith.constant 0 : i32
    %c0_i32_0 = arith.constant 0 : i32
    %c0_i32_1 = arith.constant 0 : i32
    return %arg0, %c0_i32, %c0_i32_0 : i32, i32, i32
  }
  func.func @transform_4(%arg0: i32) -> (i32, i32, i32) {
    %c0_i32 = arith.constant 0 : i32
    %c0_i32_0 = arith.constant 0 : i32
    %c0_i32_1 = arith.constant 0 : i32
    return %arg0, %c0_i32, %c0_i32_0 : i32, i32, i32
  }
}

module attributes {stable_mosaic.version = 11 : i64} {
  func.func @kernel(%arg0: i32, %arg1: memref<1x8x128xf32, #tpu.memory_space<vmem>>, %arg2: memref<1x128xf32, #tpu.memory_space<vmem>>, %arg3: memref<1x128xf32, #tpu.memory_space<vmem>>, %arg4: memref<384x128xbf16, #tpu.memory_space<vmem>>, %arg5: memref<1x128xf32, #tpu.memory_space<vmem>>, %arg6: memref<1x8x128xf32, #tpu.memory_space<vmem>>, %arg7: memref<1x2x128xf32, #tpu.memory_space<vmem>>) attributes {dimension_semantics = [#tpu.dimension_semantics<parallel>], iteration_bounds = array<i64: 2>, scalar_prefetch = 0 : i64, scratch_operands = 0 : i64, tpu.core_type = #tpu.core_type<tc>, window_params = [{transform_indices = @transform_0, window_bounds = array<i64: 1, 8, 128>}, {pipeline_mode = #tpu.pipeline_mode<synchronous>, transform_indices = @transform_1, window_bounds = array<i64: 1, 128>}, {pipeline_mode = #tpu.pipeline_mode<synchronous>, transform_indices = @transform_2, window_bounds = array<i64: 1, 128>}, {pipeline_mode = #tpu.pipeline_mode<synchronous>, transform_indices = @transform_3, window_bounds = array<i64: 384, 128>}, {pipeline_mode = #tpu.pipeline_mode<synchronous>, transform_indices = @transform_4, window_bounds = array<i64: 1, 128>}, {transform_indices = @transform_5, window_bounds = array<i64: 1, 8, 128>}, {transform_indices = @transform_6, window_bounds = array<i64: 1, 2, 128>}]} {
    %c0 = arith.constant 0 : index
    %c0_0 = arith.constant 0 : index
    %c0_1 = arith.constant 0 : index
    %0 = vector.load %arg1[%c0, %c0_0, %c0_1] : memref<1x8x128xf32, #tpu.memory_space<vmem>>, vector<1x8x128xf32>
    %1 = vector.shape_cast %0 : vector<1x8x128xf32> to vector<8x128xf32>
    %c0_2 = arith.constant 0 : index
    %c0_3 = arith.constant 0 : index
    %2 = vector.load %arg2[%c0_2, %c0_3] : memref<1x128xf32, #tpu.memory_space<vmem>>, vector<1x128xf32>
    %3 = vector.broadcast %2 : vector<1x128xf32> to vector<8x128xf32>
    %4 = arith.mulf %1, %3 : vector<8x128xf32>
    %c0_4 = arith.constant 0 : index
    %c0_5 = arith.constant 0 : index
    %5 = vector.load %arg3[%c0_4, %c0_5] : memref<1x128xf32, #tpu.memory_space<vmem>>, vector<1x128xf32>
    %6 = vector.broadcast %5 : vector<1x128xf32> to vector<8x128xf32>
    %7 = arith.addf %4, %6 : vector<8x128xf32>
    %cst = arith.constant 0.000000e+00 : f32
    %8 = vector.broadcast %cst : f32 to vector<8x128xf32>
    %9 = arith.maximumf %7, %8 : vector<8x128xf32>
    %10 = arith.truncf %9 : vector<8x128xf32> to vector<8x128xbf16>
    %cst_6 = arith.constant 0.000000e+00 : bf16
    %11 = vector.broadcast %cst_6 : bf16 to vector<1x128xbf16>
    %cst_7 = arith.constant 0.000000e+00 : bf16
    %12 = vector.broadcast %cst_7 : bf16 to vector<1x128xbf16>
    %13 = tpu.concatenate %11, %10, %12 in 0 : vector<1x128xbf16>, vector<8x128xbf16>, vector<1x128xbf16> -> vector<10x128xbf16>
    %14 = vector.extract_strided_slice %13 {offsets = [0, 0], sizes = [8, 128], strides = [1, 1]} : vector<10x128xbf16> to vector<8x128xbf16>
    %15 = vector.extract_strided_slice %13 {offsets = [1, 0], sizes = [8, 128], strides = [1, 1]} : vector<10x128xbf16> to vector<8x128xbf16>
    %16 = vector.extract_strided_slice %13 {offsets = [2, 0], sizes = [8, 128], strides = [1, 1]} : vector<10x128xbf16> to vector<8x128xbf16>
    %17 = tpu.concatenate %14, %15, %16 in 1 : vector<8x128xbf16>, vector<8x128xbf16>, vector<8x128xbf16> -> vector<8x384xbf16>
    %c0_8 = arith.constant 0 : index
    %c0_9 = arith.constant 0 : index
    %18 = vector.load %arg4[%c0_8, %c0_9] : memref<384x128xbf16, #tpu.memory_space<vmem>>, vector<384x128xbf16>
    %cst_10 = arith.constant dense<0.000000e+00> : vector<8x128xf32>
    %19 = tpu.matmul %17, %18, %cst_10 {dimension_numbers = #tpu.dot_dimension_numbers<[1], [0], [0], [1], [0, 0, 1, 1], [], []>} : vector<8x384xbf16>, vector<384x128xbf16>, vector<8x128xf32> -> vector<8x128xf32>
    %c0_11 = arith.constant 0 : index
    %c0_12 = arith.constant 0 : index
    %20 = vector.load %arg5[%c0_11, %c0_12] : memref<1x128xf32, #tpu.memory_space<vmem>>, vector<1x128xf32>
    %21 = vector.broadcast %20 : vector<1x128xf32> to vector<8x128xf32>
    %22 = arith.addf %19, %21 : vector<8x128xf32>
    %23 = vector.shape_cast %22 : vector<8x128xf32> to vector<1x8x128xf32>
    %c0_13 = arith.constant 0 : index
    %c0_14 = arith.constant 0 : index
    %c0_15 = arith.constant 0 : index
    %24 = vector.load %arg6[%c0_13, %c0_14, %c0_15] : memref<1x8x128xf32, #tpu.memory_space<vmem>>, vector<1x8x128xf32>
    tpu.vector_store %arg6[%c0_13, %c0_14, %c0_15], %23 {strides = array<i32>} : memref<1x8x128xf32, #tpu.memory_space<vmem>>, vector<1x8x128xf32>,
    %cst_16 = arith.constant dense<0.000000e+00> : vector<128xf32>
    %25 = vector.multi_reduction <add>, %22, %cst_16 [0] : vector<8x128xf32> to vector<128xf32>
    %26 = vector.shape_cast %25 : vector<128xf32> to vector<1x128xf32>
    %27 = arith.mulf %22, %22 : vector<8x128xf32>
    %cst_17 = arith.constant dense<0.000000e+00> : vector<128xf32>
    %28 = vector.multi_reduction <add>, %27, %cst_17 [0] : vector<8x128xf32> to vector<128xf32>
    %29 = vector.shape_cast %28 : vector<128xf32> to vector<1x128xf32>
    %30 = tpu.concatenate %26, %29 in 0 : vector<1x128xf32>, vector<1x128xf32> -> vector<2x128xf32>
    %31 = vector.shape_cast %30 : vector<2x128xf32> to vector<1x2x128xf32>
    %c0_18 = arith.constant 0 : index
    %c0_19 = arith.constant 0 : index
    %c0_20 = arith.constant 0 : index
    %32 = vector.load %arg7[%c0_18, %c0_19, %c0_20] : memref<1x2x128xf32, #tpu.memory_space<vmem>>, vector<1x2x128xf32>
    tpu.vector_store %arg7[%c0_18, %c0_19, %c0_20], %31 {strides = array<i32>} : memref<1x2x128xf32, #tpu.memory_space<vmem>>, vector<1x2x128xf32>,
    return
  }
  func.func @transform_0(%arg0: i32) -> (i32, i32, i32) {
    %c0_i32 = arith.constant 0 : i32
    %c0_i32_0 = arith.constant 0 : i32
    %c0_i32_1 = arith.constant 0 : i32
    return %arg0, %c0_i32, %c0_i32_0 : i32, i32, i32
  }
  func.func @transform_1(%arg0: i32) -> (i32, i32) {
    %c0_i32 = arith.constant 0 : i32
    %c0_i32_0 = arith.constant 0 : i32
    %c0_i32_1 = arith.constant 0 : i32
    return %c0_i32, %c0_i32_0 : i32, i32
  }
  func.func @transform_2(%arg0: i32) -> (i32, i32) {
    %c0_i32 = arith.constant 0 : i32
    %c0_i32_0 = arith.constant 0 : i32
    %c0_i32_1 = arith.constant 0 : i32
    return %c0_i32, %c0_i32_0 : i32, i32
  }
  func.func @transform_3(%arg0: i32) -> (i32, i32) {
    %c0_i32 = arith.constant 0 : i32
    %c0_i32_0 = arith.constant 0 : i32
    %c0_i32_1 = arith.constant 0 : i32
    return %c0_i32, %c0_i32_0 : i32, i32
  }
  func.func @transform_4(%arg0: i32) -> (i32, i32) {
    %c0_i32 = arith.constant 0 : i32
    %c0_i32_0 = arith.constant 0 : i32
    %c0_i32_1 = arith.constant 0 : i32
    return %c0_i32, %c0_i32_0 : i32, i32
  }
  func.func @transform_5(%arg0: i32) -> (i32, i32, i32) {
    %c0_i32 = arith.constant 0 : i32
    %c0_i32_0 = arith.constant 0 : i32
    %c0_i32_1 = arith.constant 0 : i32
    return %arg0, %c0_i32, %c0_i32_0 : i32, i32, i32
  }
  func.func @transform_6(%arg0: i32) -> (i32, i32, i32) {
    %c0_i32 = arith.constant 0 : i32
    %c0_i32_0 = arith.constant 0 : i32
    %c0_i32_1 = arith.constant 0 : i32
    return %arg0, %c0_i32, %c0_i32_0 : i32, i32, i32
  }
}

module attributes {stable_mosaic.version = 11 : i64} {
  func.func @kernel(%arg0: i32, %arg1: memref<1x8x128xf32, #tpu.memory_space<vmem>>, %arg2: memref<1x128xf32, #tpu.memory_space<vmem>>, %arg3: memref<1x128xf32, #tpu.memory_space<vmem>>, %arg4: memref<1x8x128xf32, #tpu.memory_space<vmem>>, %arg5: memref<1x8x128xf32, #tpu.memory_space<vmem>>) attributes {dimension_semantics = [#tpu.dimension_semantics<parallel>], iteration_bounds = array<i64: 2>, scalar_prefetch = 0 : i64, scratch_operands = 0 : i64, tpu.core_type = #tpu.core_type<tc>, window_params = [{transform_indices = @transform_0, window_bounds = array<i64: 1, 8, 128>}, {pipeline_mode = #tpu.pipeline_mode<synchronous>, transform_indices = @transform_1, window_bounds = array<i64: 1, 128>}, {pipeline_mode = #tpu.pipeline_mode<synchronous>, transform_indices = @transform_2, window_bounds = array<i64: 1, 128>}, {transform_indices = @transform_3, window_bounds = array<i64: 1, 8, 128>}, {transform_indices = @transform_4, window_bounds = array<i64: 1, 8, 128>}]} {
    %c0 = arith.constant 0 : index
    %c0_0 = arith.constant 0 : index
    %c0_1 = arith.constant 0 : index
    %0 = vector.load %arg1[%c0, %c0_0, %c0_1] : memref<1x8x128xf32, #tpu.memory_space<vmem>>, vector<1x8x128xf32>
    %1 = vector.shape_cast %0 : vector<1x8x128xf32> to vector<8x128xf32>
    %c0_2 = arith.constant 0 : index
    %c0_3 = arith.constant 0 : index
    %2 = vector.load %arg2[%c0_2, %c0_3] : memref<1x128xf32, #tpu.memory_space<vmem>>, vector<1x128xf32>
    %3 = vector.broadcast %2 : vector<1x128xf32> to vector<8x128xf32>
    %4 = arith.mulf %1, %3 : vector<8x128xf32>
    %c0_4 = arith.constant 0 : index
    %c0_5 = arith.constant 0 : index
    %5 = vector.load %arg3[%c0_4, %c0_5] : memref<1x128xf32, #tpu.memory_space<vmem>>, vector<1x128xf32>
    %6 = vector.broadcast %5 : vector<1x128xf32> to vector<8x128xf32>
    %7 = arith.addf %4, %6 : vector<8x128xf32>
    %c0_6 = arith.constant 0 : index
    %c0_7 = arith.constant 0 : index
    %c0_8 = arith.constant 0 : index
    %8 = vector.load %arg4[%c0_6, %c0_7, %c0_8] : memref<1x8x128xf32, #tpu.memory_space<vmem>>, vector<1x8x128xf32>
    %9 = vector.shape_cast %8 : vector<1x8x128xf32> to vector<8x128xf32>
    %10 = arith.addf %7, %9 : vector<8x128xf32>
    %cst = arith.constant 0.000000e+00 : f32
    %11 = vector.broadcast %cst : f32 to vector<8x128xf32>
    %12 = arith.maximumf %10, %11 : vector<8x128xf32>
    %13 = vector.shape_cast %12 : vector<8x128xf32> to vector<1x8x128xf32>
    %c0_9 = arith.constant 0 : index
    %c0_10 = arith.constant 0 : index
    %c0_11 = arith.constant 0 : index
    %14 = vector.load %arg5[%c0_9, %c0_10, %c0_11] : memref<1x8x128xf32, #tpu.memory_space<vmem>>, vector<1x8x128xf32>
    tpu.vector_store %arg5[%c0_9, %c0_10, %c0_11], %13 {strides = array<i32>} : memref<1x8x128xf32, #tpu.memory_space<vmem>>, vector<1x8x128xf32>,
    return
  }
  func.func @transform_0(%arg0: i32) -> (i32, i32, i32) {
    %c0_i32 = arith.constant 0 : i32
    %c0_i32_0 = arith.constant 0 : i32
    %c0_i32_1 = arith.constant 0 : i32
    return %arg0, %c0_i32, %c0_i32_0 : i32, i32, i32
  }
  func.func @transform_1(%arg0: i32) -> (i32, i32) {
    %c0_i32 = arith.constant 0 : i32
    %c0_i32_0 = arith.constant 0 : i32
    %c0_i32_1 = arith.constant 0 : i32
    return %c0_i32, %c0_i32_0 : i32, i32
  }
  func.func @transform_2(%arg0: i32) -> (i32, i32) {
    %c0_i32 = arith.constant 0 : i32
    %c0_i32_0 = arith.constant 0 : i32
    %c0_i32_1 = arith.constant 0 : i32
    return %c0_i32, %c0_i32_0 : i32, i32
  }
  func.func @transform_3(%arg0: i32) -> (i32, i32, i32) {
    %c0_i32 = arith.constant 0 : i32
    %c0_i32_0 = arith.constant 0 : i32
    %c0_i32_1 = arith.constant 0 : i32
    return %arg0, %c0_i32, %c0_i32_0 : i32, i32, i32
  }
  func.func @transform_4(%arg0: i32) -> (i32, i32, i32) {
    %c0_i32 = arith.constant 0 : i32
    %c0_i32_0 = arith.constant 0 : i32
    %c0_i32_1 = arith.constant 0 : i32
    return %arg0, %c0_i32, %c0_i32_0 : i32, i32, i32
  }
}

module attributes {stable_mosaic.version = 11 : i64} {
  func.func @kernel(%arg0: i32, %arg1: memref<1x8x128xf32, #tpu.memory_space<vmem>>, %arg2: memref<1x128xf32, #tpu.memory_space<vmem>>, %arg3: memref<1x128xf32, #tpu.memory_space<vmem>>, %arg4: memref<1x2x8x128xbf16, #tpu.memory_space<vmem>>, %arg5: memref<128x128xbf16, #tpu.memory_space<vmem>>, %arg6: memref<1x128xf32, #tpu.memory_space<vmem>>, %arg7: memref<384x128xbf16, #tpu.memory_space<vmem>>, %arg8: memref<1x128xf32, #tpu.memory_space<vmem>>, %arg9: memref<1x8x128xf32, #tpu.memory_space<vmem>>, %arg10: memref<1x8x128xf32, #tpu.memory_space<vmem>>, %arg11: memref<1x2x128xf32, #tpu.memory_space<vmem>>) attributes {dimension_semantics = [#tpu.dimension_semantics<parallel>], iteration_bounds = array<i64: 2>, scalar_prefetch = 0 : i64, scratch_operands = 0 : i64, tpu.core_type = #tpu.core_type<tc>, window_params = [{transform_indices = @transform_0, window_bounds = array<i64: 1, 8, 128>}, {pipeline_mode = #tpu.pipeline_mode<synchronous>, transform_indices = @transform_1, window_bounds = array<i64: 1, 128>}, {pipeline_mode = #tpu.pipeline_mode<synchronous>, transform_indices = @transform_2, window_bounds = array<i64: 1, 128>}, {transform_indices = @transform_3, window_bounds = array<i64: 1, 2, 8, 128>}, {pipeline_mode = #tpu.pipeline_mode<synchronous>, transform_indices = @transform_4, window_bounds = array<i64: 128, 128>}, {pipeline_mode = #tpu.pipeline_mode<synchronous>, transform_indices = @transform_5, window_bounds = array<i64: 1, 128>}, {pipeline_mode = #tpu.pipeline_mode<synchronous>, transform_indices = @transform_6, window_bounds = array<i64: 384, 128>}, {pipeline_mode = #tpu.pipeline_mode<synchronous>, transform_indices = @transform_7, window_bounds = array<i64: 1, 128>}, {transform_indices = @transform_8, window_bounds = array<i64: 1, 8, 128>}, {transform_indices = @transform_9, window_bounds = array<i64: 1, 8, 128>}, {transform_indices = @transform_10, window_bounds = array<i64: 1, 2, 128>}]} {
    %c0 = arith.constant 0 : index
    %c0_0 = arith.constant 0 : index
    %c0_1 = arith.constant 0 : index
    %0 = vector.load %arg1[%c0, %c0_0, %c0_1] : memref<1x8x128xf32, #tpu.memory_space<vmem>>, vector<1x8x128xf32>
    %1 = vector.shape_cast %0 : vector<1x8x128xf32> to vector<8x128xf32>
    %c0_2 = arith.constant 0 : index
    %c0_3 = arith.constant 0 : index
    %2 = vector.load %arg2[%c0_2, %c0_3] : memref<1x128xf32, #tpu.memory_space<vmem>>, vector<1x128xf32>
    %3 = vector.broadcast %2 : vector<1x128xf32> to vector<8x128xf32>
    %4 = arith.mulf %1, %3 : vector<8x128xf32>
    %c0_4 = arith.constant 0 : index
    %c0_5 = arith.constant 0 : index
    %5 = vector.load %arg3[%c0_4, %c0_5] : memref<1x128xf32, #tpu.memory_space<vmem>>, vector<1x128xf32>
    %6 = vector.broadcast %5 : vector<1x128xf32> to vector<8x128xf32>
    %7 = arith.addf %4, %6 : vector<8x128xf32>
    %c0_6 = arith.constant 0 : index
    %c0_7 = arith.constant 0 : index
    %c0_8 = arith.constant 0 : index
    %c0_9 = arith.constant 0 : index
    %8 = vector.load %arg4[%c0_6, %c0_7, %c0_8, %c0_9] : memref<1x2x8x128xbf16, #tpu.memory_space<vmem>>, vector<1x2x8x128xbf16>
    %9 = vector.shape_cast %8 : vector<1x2x8x128xbf16> to vector<2x8x128xbf16>
    %10 = vector.extract_strided_slice %9 {offsets = [0, 0, 0], sizes = [1, 8, 128], strides = [1, 1, 1]} : vector<2x8x128xbf16> to vector<1x8x128xbf16>
    %11 = vector.shape_cast %10 : vector<1x8x128xbf16> to vector<8x128xbf16>
    %12 = vector.extract_strided_slice %9 {offsets = [1, 0, 0], sizes = [1, 8, 128], strides = [1, 1, 1]} : vector<2x8x128xbf16> to vector<1x8x128xbf16>
    %13 = vector.shape_cast %12 : vector<1x8x128xbf16> to vector<8x128xbf16>
    %14 = arith.maximumf %11, %13 : vector<8x128xbf16>
    %c0_10 = arith.constant 0 : index
    %c0_11 = arith.constant 0 : index
    %15 = vector.load %arg5[%c0_10, %c0_11] : memref<128x128xbf16, #tpu.memory_space<vmem>>, vector<128x128xbf16>
    %cst = arith.constant dense<0.000000e+00> : vector<8x128xf32>
    %16 = tpu.matmul %14, %15, %cst {dimension_numbers = #tpu.dot_dimension_numbers<[1], [0], [0], [1], [0, 0, 1, 1], [], []>} : vector<8x128xbf16>, vector<128x128xbf16>, vector<8x128xf32> -> vector<8x128xf32>
    %c0_12 = arith.constant 0 : index
    %c0_13 = arith.constant 0 : index
    %17 = vector.load %arg6[%c0_12, %c0_13] : memref<1x128xf32, #tpu.memory_space<vmem>>, vector<1x128xf32>
    %18 = vector.broadcast %17 : vector<1x128xf32> to vector<8x128xf32>
    %19 = arith.addf %16, %18 : vector<8x128xf32>
    %20 = arith.addf %7, %19 : vector<8x128xf32>
    %cst_14 = arith.constant 0.000000e+00 : f32
    %21 = vector.broadcast %cst_14 : f32 to vector<8x128xf32>
    %22 = arith.maximumf %20, %21 : vector<8x128xf32>
    %23 = vector.shape_cast %22 : vector<8x128xf32> to vector<1x8x128xf32>
    %c0_15 = arith.constant 0 : index
    %c0_16 = arith.constant 0 : index
    %c0_17 = arith.constant 0 : index
    %24 = vector.load %arg9[%c0_15, %c0_16, %c0_17] : memref<1x8x128xf32, #tpu.memory_space<vmem>>, vector<1x8x128xf32>
    tpu.vector_store %arg9[%c0_15, %c0_16, %c0_17], %23 {strides = array<i32>} : memref<1x8x128xf32, #tpu.memory_space<vmem>>, vector<1x8x128xf32>,
    %25 = arith.truncf %22 : vector<8x128xf32> to vector<8x128xbf16>
    %cst_18 = arith.constant 0.000000e+00 : bf16
    %26 = vector.broadcast %cst_18 : bf16 to vector<1x128xbf16>
    %cst_19 = arith.constant 0.000000e+00 : bf16
    %27 = vector.broadcast %cst_19 : bf16 to vector<1x128xbf16>
    %28 = tpu.concatenate %26, %25, %27 in 0 : vector<1x128xbf16>, vector<8x128xbf16>, vector<1x128xbf16> -> vector<10x128xbf16>
    %29 = vector.extract_strided_slice %28 {offsets = [0, 0], sizes = [8, 128], strides = [1, 1]} : vector<10x128xbf16> to vector<8x128xbf16>
    %30 = vector.extract_strided_slice %28 {offsets = [1, 0], sizes = [8, 128], strides = [1, 1]} : vector<10x128xbf16> to vector<8x128xbf16>
    %31 = vector.extract_strided_slice %28 {offsets = [2, 0], sizes = [8, 128], strides = [1, 1]} : vector<10x128xbf16> to vector<8x128xbf16>
    %32 = tpu.concatenate %29, %30, %31 in 1 : vector<8x128xbf16>, vector<8x128xbf16>, vector<8x128xbf16> -> vector<8x384xbf16>
    %c0_20 = arith.constant 0 : index
    %c0_21 = arith.constant 0 : index
    %33 = vector.load %arg7[%c0_20, %c0_21] : memref<384x128xbf16, #tpu.memory_space<vmem>>, vector<384x128xbf16>
    %cst_22 = arith.constant dense<0.000000e+00> : vector<8x128xf32>
    %34 = tpu.matmul %32, %33, %cst_22 {dimension_numbers = #tpu.dot_dimension_numbers<[1], [0], [0], [1], [0, 0, 1, 1], [], []>} : vector<8x384xbf16>, vector<384x128xbf16>, vector<8x128xf32> -> vector<8x128xf32>
    %c0_23 = arith.constant 0 : index
    %c0_24 = arith.constant 0 : index
    %35 = vector.load %arg8[%c0_23, %c0_24] : memref<1x128xf32, #tpu.memory_space<vmem>>, vector<1x128xf32>
    %36 = vector.broadcast %35 : vector<1x128xf32> to vector<8x128xf32>
    %37 = arith.addf %34, %36 : vector<8x128xf32>
    %38 = vector.shape_cast %37 : vector<8x128xf32> to vector<1x8x128xf32>
    %c0_25 = arith.constant 0 : index
    %c0_26 = arith.constant 0 : index
    %c0_27 = arith.constant 0 : index
    %39 = vector.load %arg10[%c0_25, %c0_26, %c0_27] : memref<1x8x128xf32, #tpu.memory_space<vmem>>, vector<1x8x128xf32>
    tpu.vector_store %arg10[%c0_25, %c0_26, %c0_27], %38 {strides = array<i32>} : memref<1x8x128xf32, #tpu.memory_space<vmem>>, vector<1x8x128xf32>,
    %cst_28 = arith.constant dense<0.000000e+00> : vector<128xf32>
    %40 = vector.multi_reduction <add>, %37, %cst_28 [0] : vector<8x128xf32> to vector<128xf32>
    %41 = vector.shape_cast %40 : vector<128xf32> to vector<1x128xf32>
    %42 = arith.mulf %37, %37 : vector<8x128xf32>
    %cst_29 = arith.constant dense<0.000000e+00> : vector<128xf32>
    %43 = vector.multi_reduction <add>, %42, %cst_29 [0] : vector<8x128xf32> to vector<128xf32>
    %44 = vector.shape_cast %43 : vector<128xf32> to vector<1x128xf32>
    %45 = tpu.concatenate %41, %44 in 0 : vector<1x128xf32>, vector<1x128xf32> -> vector<2x128xf32>
    %46 = vector.shape_cast %45 : vector<2x128xf32> to vector<1x2x128xf32>
    %c0_30 = arith.constant 0 : index
    %c0_31 = arith.constant 0 : index
    %c0_32 = arith.constant 0 : index
    %47 = vector.load %arg11[%c0_30, %c0_31, %c0_32] : memref<1x2x128xf32, #tpu.memory_space<vmem>>, vector<1x2x128xf32>
    tpu.vector_store %arg11[%c0_30, %c0_31, %c0_32], %46 {strides = array<i32>} : memref<1x2x128xf32, #tpu.memory_space<vmem>>, vector<1x2x128xf32>,
    return
  }
  func.func @transform_0(%arg0: i32) -> (i32, i32, i32) {
    %c0_i32 = arith.constant 0 : i32
    %c0_i32_0 = arith.constant 0 : i32
    %c0_i32_1 = arith.constant 0 : i32
    return %arg0, %c0_i32, %c0_i32_0 : i32, i32, i32
  }
  func.func @transform_1(%arg0: i32) -> (i32, i32) {
    %c0_i32 = arith.constant 0 : i32
    %c0_i32_0 = arith.constant 0 : i32
    %c0_i32_1 = arith.constant 0 : i32
    return %c0_i32, %c0_i32_0 : i32, i32
  }
  func.func @transform_2(%arg0: i32) -> (i32, i32) {
    %c0_i32 = arith.constant 0 : i32
    %c0_i32_0 = arith.constant 0 : i32
    %c0_i32_1 = arith.constant 0 : i32
    return %c0_i32, %c0_i32_0 : i32, i32
  }
  func.func @transform_3(%arg0: i32) -> (i32, i32, i32, i32) {
    %c0_i32 = arith.constant 0 : i32
    %c0_i32_0 = arith.constant 0 : i32
    %c0_i32_1 = arith.constant 0 : i32
    %c0_i32_2 = arith.constant 0 : i32
    return %arg0, %c0_i32, %c0_i32_0, %c0_i32_1 : i32, i32, i32, i32
  }
  func.func @transform_4(%arg0: i32) -> (i32, i32) {
    %c0_i32 = arith.constant 0 : i32
    %c0_i32_0 = arith.constant 0 : i32
    %c0_i32_1 = arith.constant 0 : i32
    return %c0_i32, %c0_i32_0 : i32, i32
  }
  func.func @transform_5(%arg0: i32) -> (i32, i32) {
    %c0_i32 = arith.constant 0 : i32
    %c0_i32_0 = arith.constant 0 : i32
    %c0_i32_1 = arith.constant 0 : i32
    return %c0_i32, %c0_i32_0 : i32, i32
  }
  func.func @transform_6(%arg0: i32) -> (i32, i32) {
    %c0_i32 = arith.constant 0 : i32
    %c0_i32_0 = arith.constant 0 : i32
    %c0_i32_1 = arith.constant 0 : i32
    return %c0_i32, %c0_i32_0 : i32, i32
  }
  func.func @transform_7(%arg0: i32) -> (i32, i32) {
    %c0_i32 = arith.constant 0 : i32
    %c0_i32_0 = arith.constant 0 : i32
    %c0_i32_1 = arith.constant 0 : i32
    return %c0_i32, %c0_i32_0 : i32, i32
  }
  func.func @transform_8(%arg0: i32) -> (i32, i32, i32) {
    %c0_i32 = arith.constant 0 : i32
    %c0_i32_0 = arith.constant 0 : i32
    %c0_i32_1 = arith.constant 0 : i32
    return %arg0, %c0_i32, %c0_i32_0 : i32, i32, i32
  }
  func.func @transform_9(%arg0: i32) -> (i32, i32, i32) {
    %c0_i32 = arith.constant 0 : i32
    %c0_i32_0 = arith.constant 0 : i32
    %c0_i32_1 = arith.constant 0 : i32
    return %arg0, %c0_i32, %c0_i32_0 : i32, i32, i32
  }
  func.func @transform_10(%arg0: i32) -> (i32, i32, i32) {
    %c0_i32 = arith.constant 0 : i32
    %c0_i32_0 = arith.constant 0 : i32
    %c0_i32_1 = arith.constant 0 : i32
    return %arg0, %c0_i32, %c0_i32_0 : i32, i32, i32
  }
}

</mosaic_0001>

<llo_original>
// kernel: res_conv_forward.5
$region0: #{res_conv_forward.5}
  #allocation0 [shape = 'u32[]', space=smem, size = 0x4, offset = 0x4, fixed_abs, tag = 'smem constant byte address 0x4 - core index']
  #allocation1 [shape = 'u32[72,128]{1,0:T(1,128)}', space=vmem, size = 0x9000, scoped, tag = 'internal scratch']
  %s0 = inlined_call_operand.vmem [shape: bf16[2,8,128], index: 0, kind: input, shape index: {}]
  %s1 = inlined_call_operand.vmem [shape: bf16[128,128], index: 1, kind: input, shape index: {}]
  %s2 = inlined_call_operand.vmem [shape: f32[1,128], index: 2, kind: input, shape index: {}]
  %s3 = inlined_call_operand.vmem [shape: f32[2,8,128], index: 3, kind: output, shape index: {0}]
  %s4 = inlined_call_operand.vmem [shape: f32[2,2,128], index: 4, kind: output, shape index: {1}]
  %5 = xla_tuple %s3, %s4
  %s6 = sld [smem:[#allocation0]]
  $region53: #{res_conv_forward.5} parent=0
    _
  %s8 = ssub.s32 1, %s6
  %s9 = scalar_select 0, %s8, %s6
  loop: start=0, step=1, limit=4
  $region2: #{res_conv_forward.5} parent=0 // loop_pre_header
    _
  $region3: #{res_conv_forward.5} parent=0 // loop_header
    %s11 = sphi 0, %s15
    %p12 = scmp.ge.s32.totalorder %s11, 4
    %s21 = sphi 0, %s23
    %s24 = sphi 0, %s21
    %s25 = sphi 0, %s24
    %s41 = sphi 0, %s25
    %s45 = sphi 0, %s45
    %s47 = sphi 0, %s45
    %s48 = sphi 0, %s47
    %s62 = sphi 0, %s48
    %s66 = sphi 0, %s66
    %s68 = sphi 0, %s66
    %s69 = sphi 0, %s68
    %s83 = sphi 0, %s69
    %s89 = sphi 0, %s91
    %s92 = sphi 0, %s89
    %s93 = sphi 0, %s92
    %s109 = sphi 0, %s93
    %s115 = sphi 0, %s117
    %s118 = sphi 0, %s115
    %s119 = sphi 0, %s118
    %s135 = sphi 0, %s119
  $region4: #{res_conv_forward.5} parent=0 // loop_header_branch
    %14 = sbr.rel (%p12) target = $region8
  $region5: #{res_conv_forward.5} parent=0 // loop_body
    %s16 = ssub.s32 %s11, 1
    %s17 = ssub.s32 %s11, 2
    %s18 = sadd.s32 %s11, 1
    %s19 = ssub.s32 %s11, %s18
    %p20 = scmp.eq.s32.totalorder %s19, 0
    %s22 = sadd.s32 %s21, 1
    %s23 = scalar_select %p20, %s21, %s22
    %p26 = pneg %p20
    %p27 = scmp.eq.s32.totalorder %s11, 1
    %p28 = por %p26, %p27
    %p29 = scmp.ne.s32.totalorder %s21, %s24
    %p30 = scmp.eq.s32.totalorder %s11, 0
    %p31 = por %p29, %p30
    %p32 = scmp.ne.s32.totalorder %s21, %s24
    %p33 = scmp.eq.s32.totalorder %s16, 1
    %p34 = por %p32, %p33
    %p35 = scmp.ne.s32.totalorder %s24, %s25
    %p36 = scmp.eq.s32.totalorder %s16, 0
    %p37 = por %p35, %p36
    %p38 = scmp.ne.s32.totalorder %s24, %s25
    %p39 = scmp.eq.s32.totalorder %s17, 1
    %p40 = por %p38, %p39
    %p42 = scmp.ne.s32.totalorder %s25, %s41
    %p43 = scmp.eq.s32.totalorder %s17, 0
    %p44 = por %p42, %p43
    %s46 = sadd.s32 %s45, 1
    %p49 = scmp.eq.s32.totalorder %s11, 1
    %p50 = scmp.ne.s32.totalorder %s45, %s47
    %p51 = scmp.eq.s32.totalorder %s11, 0
    %p52 = por %p50, %p51
    %p53 = scmp.ne.s32.totalorder %s45, %s47
    %p54 = scmp.eq.s32.totalorder %s16, 1
    %p55 = por %p53, %p54
    %p56 = scmp.ne.s32.totalorder %s47, %s48
    %p57 = scmp.eq.s32.totalorder %s16, 0
    %p58 = por %p56, %p57
    %p59 = scmp.ne.s32.totalorder %s47, %s48
    %p60 = scmp.eq.s32.totalorder %s17, 1
    %p61 = por %p59, %p60
    %p63 = scmp.ne.s32.totalorder %s48, %s62
    %p64 = scmp.eq.s32.totalorder %s17, 0
    %p65 = por %p63, %p64
    %s67 = sadd.s32 %s66, 1
    %p70 = scmp.eq.s32.totalorder %s11, 1
    %p71 = scmp.ne.s32.totalorder %s66, %s68
    %p72 = scmp.eq.s32.totalorder %s11, 0
    %p73 = por %p71, %p72
    %p74 = scmp.ne.s32.totalorder %s66, %s68
    %p75 = scmp.eq.s32.totalorder %s16, 1
    %p76 = por %p74, %p75
    %p77 = scmp.ne.s32.totalorder %s68, %s69
    %p78 = scmp.eq.s32.totalorder %s16, 0
    %p79 = por %p77, %p78
    %p80 = scmp.ne.s32.totalorder %s68, %s69
    %p81 = scmp.eq.s32.totalorder %s17, 1
    %p82 = por %p80, %p81
    %p84 = scmp.ne.s32.totalorder %s69, %s83
    %p85 = scmp.eq.s32.totalorder %s17, 0
    %p86 = por %p84, %p85
    %s87 = ssub.s32 %s11, %s18
    %p88 = scmp.eq.s32.totalorder %s87, 0
    %s90 = sadd.s32 %s89, 1
    %s91 = scalar_select %p88, %s89, %s90
    %p94 = pneg %p88
    %p95 = scmp.eq.s32.totalorder %s11, 1
    %p96 = por %p94, %p95
    %p97 = scmp.ne.s32.totalorder %s89, %s92
    %p98 = scmp.eq.s32.totalorder %s11, 0
    %p99 = por %p97, %p98
    %p100 = scmp.ne.s32.totalorder %s89, %s92
    %p101 = scmp.eq.s32.totalorder %s16, 1
    %p102 = por %p100, %p101
    %p103 = scmp.ne.s32.totalorder %s92, %s93
    %p104 = scmp.eq.s32.totalorder %s16, 0
    %p105 = por %p103, %p104
    %p106 = scmp.ne.s32.totalorder %s92, %s93
    %p107 = scmp.eq.s32.totalorder %s17, 1
    %p108 = por %p106, %p107
    %p110 = scmp.ne.s32.totalorder %s93, %s109
    %p111 = scmp.eq.s32.totalorder %s17, 0
    %p112 = por %p110, %p111
    %s113 = ssub.s32 %s11, %s18
    %p114 = scmp.eq.s32.totalorder %s113, 0
    %s116 = sadd.s32 %s115, 1
    %s117 = scalar_select %p114, %s115, %s116
    %p120 = pneg %p114
    %p121 = scmp.eq.s32.totalorder %s11, 1
    %p122 = por %p120, %p121
    %p123 = scmp.ne.s32.totalorder %s115, %s118
    %p124 = scmp.eq.s32.totalorder %s11, 0
    %p125 = por %p123, %p124
    %p126 = scmp.ne.s32.totalorder %s115, %s118
    %p127 = scmp.eq.s32.totalorder %s16, 1
    %p128 = por %p126, %p127
    %p129 = scmp.ne.s32.totalorder %s118, %s119
    %p130 = scmp.eq.s32.totalorder %s16, 0
    %p131 = por %p129, %p130
    %p132 = scmp.ne.s32.totalorder %s118, %s119
    %p133 = scmp.eq.s32.totalorder %s17, 1
    %p134 = por %p132, %p133
    %p136 = scmp.ne.s32.totalorder %s119, %s135
    %p137 = scmp.eq.s32.totalorder %s17, 0
    %p138 = por %p136, %p137
    %p139 = scmp.le.s32.totalorder 1, %s11
    %p140 = scmp.lt.s32.totalorder %s11, 3
    %p141 = pnand %p139, %p140
    %p142 = pneg %p141
    // Predicated region
    $region9: #{res_conv_forward.5} parent=5 // pred_check
      _
    $region10: #{res_conv_forward.5} parent=5 // pred_check_branch
      %144 = sbr.rel (%p141) target = $region12
    $region11: #{res_conv_forward.5} parent=5 // pred_region
      %s145 = ssub.s32 %s11, 1
      // Predicated region
      $region13: #{res_conv_forward.5} parent=11 // pred_check
        %p146 = pneg %p58
      $region14: #{res_conv_forward.5} parent=11 // pred_check_branch
        %148 = sbr.rel (%p146) target = $region16
      $region15: #{res_conv_forward.5} parent=11 // pred_region
        _
      $region16: #{res_conv_forward.5} parent=11 // pred_fallthru
        _
      // Predicated region
      $region17: #{res_conv_forward.5} parent=11 // pred_check
        %p149 = pneg %p79
      $region18: #{res_conv_forward.5} parent=11 // pred_check_branch
        %151 = sbr.rel (%p149) target = $region20
      $region19: #{res_conv_forward.5} parent=11 // pred_region
        _
      $region20: #{res_conv_forward.5} parent=11 // pred_fallthru
        _
    $region12: #{res_conv_forward.5} parent=5 // pred_fallthru
      _
    %p152 = scmp.lt.s32.totalorder %s11, 2
    // Predicated region
    $region21: #{res_conv_forward.5} parent=5 // pred_check
      %p153 = pneg %p152
    $region22: #{res_conv_forward.5} parent=5 // pred_check_branch
      %155 = sbr.rel (%p153) target = $region24
    $region23: #{res_conv_forward.5} parent=5 // pred_region
      // Predicated region
      $region25: #{res_conv_forward.5} parent=23 // pred_check
        %p156 = pneg %p31
      $region26: #{res_conv_forward.5} parent=23 // pred_check_branch
        %158 = sbr.rel (%p156) target = $region28
      $region27: #{res_conv_forward.5} parent=23 // pred_region
        %p159 = scmp.lt.s32.totalorder %s11, 1
        %s160 = scalar_select %p159, %s11, 1
        %s161 = smul.addr %s160, 4
        %s162 = scalar_lea.vmem %s0, %s161
      $region28: #{res_conv_forward.5} parent=23 // pred_fallthru
        _
    $region24: #{res_conv_forward.5} parent=5 // pred_fallthru
      _
    %p163 = scmp.le.s32.totalorder 1, %s11
    %p164 = scmp.lt.s32.totalorder %s11, 3
    %p165 = pnand %p163, %p164
    %p166 = pneg %p165
    // Predicated region
    $region29: #{res_conv_forward.5} parent=5 // pred_check
      _
    $region30: #{res_conv_forward.5} parent=5 // pred_check_branch
      %168 = sbr.rel (%p165) target = $region32
    $region31: #{res_conv_forward.5} parent=5 // pred_region
      %s169 = ssub.s32 %s11, 1
      %p170 = scmp.lt.s32.totalorder %s16, 1
      %s171 = scalar_select %p170, %s16, 1
      %s172 = smul.addr %s171, 4
      %s173 = scalar_lea.vmem %s0, %s172
      %p174 = pneg %p37
      %p175 = pneg %p34
      %p176 = pneg %p58
      %p177 = pneg %p55
      %p178 = pneg %p79
      %p179 = pneg %p76
      %p180 = pneg %p105
      %p181 = pneg %p102
      %p182 = scmp.lt.s32.totalorder %s16, 1
      %s183 = scalar_select %p182, %s16, 1
      %s184 = smul.addr %s183, 8
      %s185 = scalar_lea.vmem %s3, %s184
      %p186 = pneg %p131
      %p187 = pneg %p128
      %p188 = scmp.lt.s32.totalorder %s16, 1
      %s189 = scalar_select %p188, %s16, 1
      %s190 = smul.addr %s189, 2
      %s191 = scalar_lea.vmem %s4, %s190
      %p192 = scmp.lt.s32.totalorder %s16, 1
      %s193 = scalar_select %p192, %s16, 1
      %s194 = smul.addr %s193, 4
      %s195 = scalar_lea.vmem %s0, %s194
      %p196 = scmp.lt.s32.totalorder %s16, 1
      %s197 = scalar_select %p196, %s16, 1
      %s198 = smul.addr %s197, 8
      %s199 = scalar_lea.vmem %s3, %s198
      %p200 = scmp.lt.s32.totalorder %s16, 1
      %s201 = scalar_select %p200, %s16, 1
      %s202 = smul.addr %s201, 2
      %s203 = scalar_lea.vmem %s4, %s202
      %v204 = vld [vmem:[%s195] sm:$0xf]
      %v205 = vld [vmem:[%s1] sm:$0xf]
      %v206 = vld [vmem:[%s1 + $0x4] sm:$0xf]
      %v207 = vld [vmem:[%s1 + $0x8] sm:$0xf]
      %v208 = vld [vmem:[%s1 + $0xc] sm:$0xf]
      %v209 = vld [vmem:[%s1 + $0x10] sm:$0xf]
      %v210 = vld [vmem:[%s1 + $0x14] sm:$0xf]
      %v211 = vld [vmem:[%s1 + $0x18] sm:$0xf]
      %v212 = vld [vmem:[%s1 + $0x1c] sm:$0xf]
      %v213 = vld [vmem:[%s1 + $0x20] sm:$0xf]
      %v214 = vld [vmem:[%s1 + $0x24] sm:$0xf]
      %v215 = vld [vmem:[%s1 + $0x28] sm:$0xf]
      %v216 = vld [vmem:[%s1 + $0x2c] sm:$0xf]
      %v217 = vld [vmem:[%s1 + $0x30] sm:$0xf]
      %v218 = vld [vmem:[%s1 + $0x34] sm:$0xf]
      %v219 = vld [vmem:[%s1 + $0x38] sm:$0xf]
      %v220 = vld [vmem:[%s1 + $0x3c] sm:$0xf]
      %v221 = vld [vmem:[%s2] sm:$0x1]
      %v223 = vperm.slane %v221, 0
      %v241 = vunpack.c.l.b16 %v205
      %v242 = vunpack.c.l.b16 %v206
      %v243 = vunpack.c.l.b16 %v207
      %v244 = vunpack.c.l.b16 %v208
      %v245 = vunpack.c.l.b16 %v209
      %v246 = vunpack.c.l.b16 %v210
      %v247 = vunpack.c.l.b16 %v211
      %v248 = vunpack.c.l.b16 %v212
      %v249 = vunpack.c.l.b16 %v213
      %v250 = vunpack.c.l.b16 %v214
      %v251 = vunpack.c.l.b16 %v215
      %v252 = vunpack.c.l.b16 %v216
      %v253 = vunpack.c.l.b16 %v217
      %v254 = vunpack.c.l.b16 %v218
      %v255 = vunpack.c.l.b16 %v219
      %v256 = vunpack.c.l.b16 %v220
      %v257 = vpack.c.b16 %v242, %v241
      %v258 = vpack.c.b16 %v244, %v243
      %v259 = vpack.c.b16 %v246, %v245
      %v260 = vpack.c.b16 %v248, %v247
      %v261 = vpack.c.b16 %v250, %v249
      %v262 = vpack.c.b16 %v252, %v251
      %v263 = vpack.c.b16 %v254, %v253
      %v264 = vpack.c.b16 %v256, %v255
      %273 = vmatpush.bf16.msra.mxu0 %v264
      %274 = vmatpush.bf16.msra.mxu0 %v263
      %275 = vmatpush.bf16.msra.mxu0 %v262
      %276 = vmatpush.bf16.msra.mxu0 %v261
      %277 = vmatpush.bf16.msra.mxu0 %v260
      %278 = vmatpush.bf16.msra.mxu0 %v259
      %279 = vmatpush.bf16.msra.mxu0 %v258
      %280 = vmatpush.bf16.msra.mxu0 %v257
      %281 = vmatmul.bf16.gmra.mxu0 %v204
      %v282 = vpop.f32.mrf.mxu0
      %v283 = vadd.f32 %v223, %v282
      %v284 = vpop.f32.mrf.mxu0
      %285 = vdwg.mxu0
      %286 = vst [vmem:[%s199] sm:$0xff] %v283
      %v287 = vrot.slane %v283, 4
      %v288 = vadd.f32 %v283, %v287
      %v289 = vrot.slane %v288, 2
      %v290 = vadd.f32 %v288, %v289
      %v291 = vrot.slane %v290, 1
      %v292 = vadd.f32 %v290, %v291
      %v293 = vmul.f32 %v283, %v283
      %v294 = vrot.slane %v293, 4
      %v295 = vadd.f32 %v293, %v294
      %v296 = vrot.slane %v295, 2
      %v297 = vadd.f32 %v295, %v296
      %v298 = vrot.slane %v297, 1
      %v299 = vadd.f32 %v297, %v298
      %vm300 = vcmask 1040384
      %v301 = vsel %vm300, %v292, %v299
      %302 = vst [vmem:[%s203] sm:$0x3] %v301
      %p303 = scmp.lt.s32.totalorder %s16, 1
      %s304 = scalar_select %p303, %s16, 1
      %s305 = smul.addr %s304, 8
      %s306 = scalar_lea.vmem %s3, %s305
      %p307 = scmp.lt.s32.totalorder %s16, 1
      %s308 = scalar_select %p307, %s16, 1
      %s309 = smul.addr %s308, 2
      %s310 = scalar_lea.vmem %s4, %s309
      // Predicated region
      $region33: #{res_conv_forward.5} parent=31 // pred_check
        %p311 = pneg %p102
      $region34: #{res_conv_forward.5} parent=31 // pred_check_branch
        %313 = sbr.rel (%p311) target = $region36
      $region35: #{res_conv_forward.5} parent=31 // pred_region
        _
      $region36: #{res_conv_forward.5} parent=31 // pred_fallthru
        _
      // Predicated region
      $region37: #{res_conv_forward.5} parent=31 // pred_check
        %p314 = pneg %p128
      $region38: #{res_conv_forward.5} parent=31 // pred_check_branch
        %316 = sbr.rel (%p314) target = $region40
      $region39: #{res_conv_forward.5} parent=31 // pred_region
        _
      $region40: #{res_conv_forward.5} parent=31 // pred_fallthru
        _
    $region32: #{res_conv_forward.5} parent=5 // pred_fallthru
      _
    %p317 = scmp.le.s32.totalorder 2, %s11
    // Predicated region
    $region41: #{res_conv_forward.5} parent=5 // pred_check
      %p318 = pneg %p317
    $region42: #{res_conv_forward.5} parent=5 // pred_check_branch
      %320 = sbr.rel (%p318) target = $region44
    $region43: #{res_conv_forward.5} parent=5 // pred_region
      %s321 = ssub.s32 %s11, 2
      // Predicated region
      $region45: #{res_conv_forward.5} parent=43 // pred_check
        %p322 = pneg %p108
      $region46: #{res_conv_forward.5} parent=43 // pred_check_branch
        %324 = sbr.rel (%p322) target = $region48
      $region47: #{res_conv_forward.5} parent=43 // pred_region
        %p325 = scmp.lt.s32.totalorder %s17, 1
        %s326 = scalar_select %p325, %s17, 1
        %s327 = smul.addr %s326, 8
        %s328 = scalar_lea.vmem %s3, %s327
      $region48: #{res_conv_forward.5} parent=43 // pred_fallthru
        _
      // Predicated region
      $region49: #{res_conv_forward.5} parent=43 // pred_check
        %p329 = pneg %p134
      $region50: #{res_conv_forward.5} parent=43 // pred_check_branch
        %331 = sbr.rel (%p329) target = $region52
      $region51: #{res_conv_forward.5} parent=43 // pred_region
        %p332 = scmp.lt.s32.totalorder %s17, 1
        %s333 = scalar_select %p332, %s17, 1
        %s334 = smul.addr %s333, 2
        %s335 = scalar_lea.vmem %s4, %s334
      $region52: #{res_conv_forward.5} parent=43 // pred_fallthru
        _
    $region44: #{res_conv_forward.5} parent=5 // pred_fallthru
      _
  $region6: #{res_conv_forward.5} parent=0 // loop_footer
    %s15 = sadd.s32 1, %s11
  $region7: #{res_conv_forward.5} parent=0 // loop_footer_branch
    %10 = sbr.rel target = $region3
  $region8: #{res_conv_forward.5} parent=0 // loop_exit
    _

// kernel: res_conv_forward.9
$region0: #{res_conv_forward.9}
  #allocation0 [shape = 'u32[]', space=smem, size = 0x4, offset = 0x4, fixed_abs, tag = 'smem constant byte address 0x4 - core index']
  #allocation1 [shape = 'u32[72,128]{1,0:T(1,128)}', space=vmem, size = 0x9000, scoped, tag = 'internal scratch']
  %s0 = inlined_call_operand.vmem [shape: f32[2,8,128], index: 0, kind: input, shape index: {}]
  %s1 = inlined_call_operand.vmem [shape: f32[1,128], index: 1, kind: input, shape index: {}]
  %s2 = inlined_call_operand.vmem [shape: f32[1,128], index: 2, kind: input, shape index: {}]
  %s3 = inlined_call_operand.vmem [shape: f32[2,8,128], index: 3, kind: input, shape index: {}]
  %s4 = inlined_call_operand.vmem [shape: f32[2,8,128], index: 4, kind: output, shape index: {}]
  %s5 = sld [smem:[#allocation0]]
  $region49: #{res_conv_forward.9} parent=0
    _
  %s7 = ssub.s32 1, %s5
  %s8 = scalar_select 0, %s7, %s5
  loop: start=0, step=1, limit=4
  $region2: #{res_conv_forward.9} parent=0 // loop_pre_header
    _
  $region3: #{res_conv_forward.9} parent=0 // loop_header
    %s10 = sphi 0, %s14
    %p11 = scmp.ge.s32.totalorder %s10, 4
    %s20 = sphi 0, %s22
    %s23 = sphi 0, %s20
    %s24 = sphi 0, %s23
    %s40 = sphi 0, %s24
    %s44 = sphi 0, %s44
    %s46 = sphi 0, %s44
    %s47 = sphi 0, %s46
    %s61 = sphi 0, %s47
    %s65 = sphi 0, %s65
    %s67 = sphi 0, %s65
    %s68 = sphi 0, %s67
    %s82 = sphi 0, %s68
    %s88 = sphi 0, %s90
    %s91 = sphi 0, %s88
    %s92 = sphi 0, %s91
    %s108 = sphi 0, %s92
    %s114 = sphi 0, %s116
    %s117 = sphi 0, %s114
    %s118 = sphi 0, %s117
    %s134 = sphi 0, %s118
  $region4: #{res_conv_forward.9} parent=0 // loop_header_branch
    %13 = sbr.rel (%p11) target = $region8
  $region5: #{res_conv_forward.9} parent=0 // loop_body
    %s15 = ssub.s32 %s10, 1
    %s16 = ssub.s32 %s10, 2
    %s17 = sadd.s32 %s10, 1
    %s18 = ssub.s32 %s10, %s17
    %p19 = scmp.eq.s32.totalorder %s18, 0
    %s21 = sadd.s32 %s20, 1
    %s22 = scalar_select %p19, %s20, %s21
    %p25 = pneg %p19
    %p26 = scmp.eq.s32.totalorder %s10, 1
    %p27 = por %p25, %p26
    %p28 = scmp.ne.s32.totalorder %s20, %s23
    %p29 = scmp.eq.s32.totalorder %s10, 0
    %p30 = por %p28, %p29
    %p31 = scmp.ne.s32.totalorder %s20, %s23
    %p32 = scmp.eq.s32.totalorder %s15, 1
    %p33 = por %p31, %p32
    %p34 = scmp.ne.s32.totalorder %s23, %s24
    %p35 = scmp.eq.s32.totalorder %s15, 0
    %p36 = por %p34, %p35
    %p37 = scmp.ne.s32.totalorder %s23, %s24
    %p38 = scmp.eq.s32.totalorder %s16, 1
    %p39 = por %p37, %p38
    %p41 = scmp.ne.s32.totalorder %s24, %s40
    %p42 = scmp.eq.s32.totalorder %s16, 0
    %p43 = por %p41, %p42
    %s45 = sadd.s32 %s44, 1
    %p48 = scmp.eq.s32.totalorder %s10, 1
    %p49 = scmp.ne.s32.totalorder %s44, %s46
    %p50 = scmp.eq.s32.totalorder %s10, 0
    %p51 = por %p49, %p50
    %p52 = scmp.ne.s32.totalorder %s44, %s46
    %p53 = scmp.eq.s32.totalorder %s15, 1
    %p54 = por %p52, %p53
    %p55 = scmp.ne.s32.totalorder %s46, %s47
    %p56 = scmp.eq.s32.totalorder %s15, 0
    %p57 = por %p55, %p56
    %p58 = scmp.ne.s32.totalorder %s46, %s47
    %p59 = scmp.eq.s32.totalorder %s16, 1
    %p60 = por %p58, %p59
    %p62 = scmp.ne.s32.totalorder %s47, %s61
    %p63 = scmp.eq.s32.totalorder %s16, 0
    %p64 = por %p62, %p63
    %s66 = sadd.s32 %s65, 1
    %p69 = scmp.eq.s32.totalorder %s10, 1
    %p70 = scmp.ne.s32.totalorder %s65, %s67
    %p71 = scmp.eq.s32.totalorder %s10, 0
    %p72 = por %p70, %p71
    %p73 = scmp.ne.s32.totalorder %s65, %s67
    %p74 = scmp.eq.s32.totalorder %s15, 1
    %p75 = por %p73, %p74
    %p76 = scmp.ne.s32.totalorder %s67, %s68
    %p77 = scmp.eq.s32.totalorder %s15, 0
    %p78 = por %p76, %p77
    %p79 = scmp.ne.s32.totalorder %s67, %s68
    %p80 = scmp.eq.s32.totalorder %s16, 1
    %p81 = por %p79, %p80
    %p83 = scmp.ne.s32.totalorder %s68, %s82
    %p84 = scmp.eq.s32.totalorder %s16, 0
    %p85 = por %p83, %p84
    %s86 = ssub.s32 %s10, %s17
    %p87 = scmp.eq.s32.totalorder %s86, 0
    %s89 = sadd.s32 %s88, 1
    %s90 = scalar_select %p87, %s88, %s89
    %p93 = pneg %p87
    %p94 = scmp.eq.s32.totalorder %s10, 1
    %p95 = por %p93, %p94
    %p96 = scmp.ne.s32.totalorder %s88, %s91
    %p97 = scmp.eq.s32.totalorder %s10, 0
    %p98 = por %p96, %p97
    %p99 = scmp.ne.s32.totalorder %s88, %s91
    %p100 = scmp.eq.s32.totalorder %s15, 1
    %p101 = por %p99, %p100
    %p102 = scmp.ne.s32.totalorder %s91, %s92
    %p103 = scmp.eq.s32.totalorder %s15, 0
    %p104 = por %p102, %p103
    %p105 = scmp.ne.s32.totalorder %s91, %s92
    %p106 = scmp.eq.s32.totalorder %s16, 1
    %p107 = por %p105, %p106
    %p109 = scmp.ne.s32.totalorder %s92, %s108
    %p110 = scmp.eq.s32.totalorder %s16, 0
    %p111 = por %p109, %p110
    %s112 = ssub.s32 %s10, %s17
    %p113 = scmp.eq.s32.totalorder %s112, 0
    %s115 = sadd.s32 %s114, 1
    %s116 = scalar_select %p113, %s114, %s115
    %p119 = pneg %p113
    %p120 = scmp.eq.s32.totalorder %s10, 1
    %p121 = por %p119, %p120
    %p122 = scmp.ne.s32.totalorder %s114, %s117
    %p123 = scmp.eq.s32.totalorder %s10, 0
    %p124 = por %p122, %p123
    %p125 = scmp.ne.s32.totalorder %s114, %s117
    %p126 = scmp.eq.s32.totalorder %s15, 1
    %p127 = por %p125, %p126
    %p128 = scmp.ne.s32.totalorder %s117, %s118
    %p129 = scmp.eq.s32.totalorder %s15, 0
    %p130 = por %p128, %p129
    %p131 = scmp.ne.s32.totalorder %s117, %s118
    %p132 = scmp.eq.s32.totalorder %s16, 1
    %p133 = por %p131, %p132
    %p135 = scmp.ne.s32.totalorder %s118, %s134
    %p136 = scmp.eq.s32.totalorder %s16, 0
    %p137 = por %p135, %p136
    %p138 = scmp.le.s32.totalorder 1, %s10
    %p139 = scmp.lt.s32.totalorder %s10, 3
    %p140 = pnand %p138, %p139
    %p141 = pneg %p140
    // Predicated region
    $region9: #{res_conv_forward.9} parent=5 // pred_check
      _
    $region10: #{res_conv_forward.9} parent=5 // pred_check_branch
      %143 = sbr.rel (%p140) target = $region12
    $region11: #{res_conv_forward.9} parent=5 // pred_region
      %s144 = ssub.s32 %s10, 1
      // Predicated region
      $region13: #{res_conv_forward.9} parent=11 // pred_check
        %p145 = pneg %p57
      $region14: #{res_conv_forward.9} parent=11 // pred_check_branch
        %147 = sbr.rel (%p145) target = $region16
      $region15: #{res_conv_forward.9} parent=11 // pred_region
        _
      $region16: #{res_conv_forward.9} parent=11 // pred_fallthru
        _
      // Predicated region
      $region17: #{res_conv_forward.9} parent=11 // pred_check
        %p148 = pneg %p78
      $region18: #{res_conv_forward.9} parent=11 // pred_check_branch
        %150 = sbr.rel (%p148) target = $region20
      $region19: #{res_conv_forward.9} parent=11 // pred_region
        _
      $region20: #{res_conv_forward.9} parent=11 // pred_fallthru
        _
    $region12: #{res_conv_forward.9} parent=5 // pred_fallthru
      _
    %p151 = scmp.lt.s32.totalorder %s10, 2
    // Predicated region
    $region21: #{res_conv_forward.9} parent=5 // pred_check
      %p152 = pneg %p151
    $region22: #{res_conv_forward.9} parent=5 // pred_check_branch
      %154 = sbr.rel (%p152) target = $region24
    $region23: #{res_conv_forward.9} parent=5 // pred_region
      // Predicated region
      $region25: #{res_conv_forward.9} parent=23 // pred_check
        %p155 = pneg %p30
      $region26: #{res_conv_forward.9} parent=23 // pred_check_branch
        %157 = sbr.rel (%p155) target = $region28
      $region27: #{res_conv_forward.9} parent=23 // pred_region
        %p158 = scmp.lt.s32.totalorder %s10, 1
        %s159 = scalar_select %p158, %s10, 1
        %s160 = smul.addr %s159, 8
        %s161 = scalar_lea.vmem %s0, %s160
      $region28: #{res_conv_forward.9} parent=23 // pred_fallthru
        _
      // Predicated region
      $region29: #{res_conv_forward.9} parent=23 // pred_check
        %p162 = pneg %p98
      $region30: #{res_conv_forward.9} parent=23 // pred_check_branch
        %164 = sbr.rel (%p162) target = $region32
      $region31: #{res_conv_forward.9} parent=23 // pred_region
        %p165 = scmp.lt.s32.totalorder %s10, 1
        %s166 = scalar_select %p165, %s10, 1
        %s167 = smul.addr %s166, 8
        %s168 = scalar_lea.vmem %s3, %s167
      $region32: #{res_conv_forward.9} parent=23 // pred_fallthru
        _
    $region24: #{res_conv_forward.9} parent=5 // pred_fallthru
      _
    %p169 = scmp.le.s32.totalorder 1, %s10
    %p170 = scmp.lt.s32.totalorder %s10, 3
    %p171 = pnand %p169, %p170
    %p172 = pneg %p171
    // Predicated region
    $region33: #{res_conv_forward.9} parent=5 // pred_check
      _
    $region34: #{res_conv_forward.9} parent=5 // pred_check_branch
      %174 = sbr.rel (%p171) target = $region36
    $region35: #{res_conv_forward.9} parent=5 // pred_region
      %s175 = ssub.s32 %s10, 1
      %p176 = scmp.lt.s32.totalorder %s15, 1
      %s177 = scalar_select %p176, %s15, 1
      %s178 = smul.addr %s177, 8
      %s179 = scalar_lea.vmem %s0, %s178
      %p180 = pneg %p36
      %p181 = pneg %p33
      %p182 = pneg %p57
      %p183 = pneg %p54
      %p184 = pneg %p78
      %p185 = pneg %p75
      %p186 = scmp.lt.s32.totalorder %s15, 1
      %s187 = scalar_select %p186, %s15, 1
      %s188 = smul.addr %s187, 8
      %s189 = scalar_lea.vmem %s3, %s188
      %p190 = pneg %p104
      %p191 = pneg %p101
      %p192 = pneg %p130
      %p193 = pneg %p127
      %p194 = scmp.lt.s32.totalorder %s15, 1
      %s195 = scalar_select %p194, %s15, 1
      %s196 = smul.addr %s195, 8
      %s197 = scalar_lea.vmem %s4, %s196
      %p198 = scmp.lt.s32.totalorder %s15, 1
      %s199 = scalar_select %p198, %s15, 1
      %s200 = smul.addr %s199, 8
      %s201 = scalar_lea.vmem %s0, %s200
      %p202 = scmp.lt.s32.totalorder %s15, 1
      %s203 = scalar_select %p202, %s15, 1
      %s204 = smul.addr %s203, 8
      %s205 = scalar_lea.vmem %s3, %s204
      %p206 = scmp.lt.s32.totalorder %s15, 1
      %s207 = scalar_select %p206, %s15, 1
      %s208 = smul.addr %s207, 8
      %s209 = scalar_lea.vmem %s4, %s208
      %v210 = vld [vmem:[%s201] sm:$0xff]
      %v211 = vld [vmem:[%s1] sm:$0x1]
      %v213 = vperm.slane %v211, 0
      %v215 = vmul.f32 %v210, %v213
      %v216 = vld [vmem:[%s2] sm:$0x1]
      %v218 = vperm.slane %v216, 0
      %v220 = vadd.f32 %v215, %v218
      %v221 = vld [vmem:[%s205] sm:$0xff]
      %v222 = vadd.f32 %v220, %v221
      %v223 = vmax.f32 %v222, 0.0
      %224 = vst [vmem:[%s209] sm:$0xff] %v223
      %p225 = scmp.lt.s32.totalorder %s15, 1
      %s226 = scalar_select %p225, %s15, 1
      %s227 = smul.addr %s226, 8
      %s228 = scalar_lea.vmem %s4, %s227
      // Predicated region
      $region37: #{res_conv_forward.9} parent=35 // pred_check
        %p229 = pneg %p127
      $region38: #{res_conv_forward.9} parent=35 // pred_check_branch
        %231 = sbr.rel (%p229) target = $region40
      $region39: #{res_conv_forward.9} parent=35 // pred_region
        _
      $region40: #{res_conv_forward.9} parent=35 // pred_fallthru
        _
    $region36: #{res_conv_forward.9} parent=5 // pred_fallthru
      _
    %p232 = scmp.le.s32.totalorder 2, %s10
    // Predicated region
    $region41: #{res_conv_forward.9} parent=5 // pred_check
      %p233 = pneg %p232
    $region42: #{res_conv_forward.9} parent=5 // pred_check_branch
      %235 = sbr.rel (%p233) target = $region44
    $region43: #{res_conv_forward.9} parent=5 // pred_region
      %s236 = ssub.s32 %s10, 2
      // Predicated region
      $region45: #{res_conv_forward.9} parent=43 // pred_check
        %p237 = pneg %p133
      $region46: #{res_conv_forward.9} parent=43 // pred_check_branch
        %239 = sbr.rel (%p237) target = $region48
      $region47: #{res_conv_forward.9} parent=43 // pred_region
        %p240 = scmp.lt.s32.totalorder %s16, 1
        %s241 = scalar_select %p240, %s16, 1
        %s242 = smul.addr %s241, 8
        %s243 = scalar_lea.vmem %s4, %s242
      $region48: #{res_conv_forward.9} parent=43 // pred_fallthru
        _
    $region44: #{res_conv_forward.9} parent=5 // pred_fallthru
      _
  $region6: #{res_conv_forward.9} parent=0 // loop_footer
    %s14 = sadd.s32 1, %s10
  $region7: #{res_conv_forward.9} parent=0 // loop_footer_branch
    %9 = sbr.rel target = $region3
  $region8: #{res_conv_forward.9} parent=0 // loop_exit
    _

// kernel: res_conv_forward.6
$region0: #{res_conv_forward.6}
  #allocation0 [shape = 'u32[]', space=smem, size = 0x4, offset = 0x4, fixed_abs, tag = 'smem constant byte address 0x4 - core index']
  #allocation1 [shape = 'u32[72,128]{1,0:T(1,128)}', space=vmem, size = 0x9000, scoped, tag = 'internal scratch']
  %s0 = inlined_call_operand.vmem [shape: f32[2,8,128], index: 0, kind: input, shape index: {}]
  %s1 = inlined_call_operand.vmem [shape: f32[1,128], index: 1, kind: input, shape index: {}]
  %s2 = inlined_call_operand.vmem [shape: f32[1,128], index: 2, kind: input, shape index: {}]
  %s3 = inlined_call_operand.vmem [shape: bf16[384,128], index: 3, kind: input, shape index: {}]
  %s4 = inlined_call_operand.vmem [shape: f32[1,128], index: 4, kind: input, shape index: {}]
  %s5 = inlined_call_operand.vmem [shape: f32[2,8,128], index: 5, kind: output, shape index: {0}]
  %s6 = inlined_call_operand.vmem [shape: f32[2,2,128], index: 6, kind: output, shape index: {1}]
  %7 = xla_tuple %s5, %s6
  %s8 = sld [smem:[#allocation0]]
  $region61: #{res_conv_forward.6} parent=0
    _
  %s10 = ssub.s32 1, %s8
  %s11 = scalar_select 0, %s10, %s8
  loop: start=0, step=1, limit=4
  $region2: #{res_conv_forward.6} parent=0 // loop_pre_header
    _
  $region3: #{res_conv_forward.6} parent=0 // loop_header
    %s13 = sphi 0, %s17
    %p14 = scmp.ge.s32.totalorder %s13, 4
    %s23 = sphi 0, %s25
    %s26 = sphi 0, %s23
    %s27 = sphi 0, %s26
    %s43 = sphi 0, %s27
    %s47 = sphi 0, %s47
    %s49 = sphi 0, %s47
    %s50 = sphi 0, %s49
    %s64 = sphi 0, %s50
    %s68 = sphi 0, %s68
    %s70 = sphi 0, %s68
    %s71 = sphi 0, %s70
    %s85 = sphi 0, %s71
    %s89 = sphi 0, %s89
    %s91 = sphi 0, %s89
    %s92 = sphi 0, %s91
    %s106 = sphi 0, %s92
    %s110 = sphi 0, %s110
    %s112 = sphi 0, %s110
    %s113 = sphi 0, %s112
    %s127 = sphi 0, %s113
    %s133 = sphi 0, %s135
    %s136 = sphi 0, %s133
    %s137 = sphi 0, %s136
    %s153 = sphi 0, %s137
    %s159 = sphi 0, %s161
    %s162 = sphi 0, %s159
    %s163 = sphi 0, %s162
    %s179 = sphi 0, %s163
  $region4: #{res_conv_forward.6} parent=0 // loop_header_branch
    %16 = sbr.rel (%p14) target = $region8
  $region5: #{res_conv_forward.6} parent=0 // loop_body
    %s18 = ssub.s32 %s13, 1
    %s19 = ssub.s32 %s13, 2
    %s20 = sadd.s32 %s13, 1
    %s21 = ssub.s32 %s13, %s20
    %p22 = scmp.eq.s32.totalorder %s21, 0
    %s24 = sadd.s32 %s23, 1
    %s25 = scalar_select %p22, %s23, %s24
    %p28 = pneg %p22
    %p29 = scmp.eq.s32.totalorder %s13, 1
    %p30 = por %p28, %p29
    %p31 = scmp.ne.s32.totalorder %s23, %s26
    %p32 = scmp.eq.s32.totalorder %s13, 0
    %p33 = por %p31, %p32
    %p34 = scmp.ne.s32.totalorder %s23, %s26
    %p35 = scmp.eq.s32.totalorder %s18, 1
    %p36 = por %p34, %p35
    %p37 = scmp.ne.s32.totalorder %s26, %s27
    %p38 = scmp.eq.s32.totalorder %s18, 0
    %p39 = por %p37, %p38
    %p40 = scmp.ne.s32.totalorder %s26, %s27
    %p41 = scmp.eq.s32.totalorder %s19, 1
    %p42 = por %p40, %p41
    %p44 = scmp.ne.s32.totalorder %s27, %s43
    %p45 = scmp.eq.s32.totalorder %s19, 0
    %p46 = por %p44, %p45
    %s48 = sadd.s32 %s47, 1
    %p51 = scmp.eq.s32.totalorder %s13, 1
    %p52 = scmp.ne.s32.totalorder %s47, %s49
    %p53 = scmp.eq.s32.totalorder %s13, 0
    %p54 = por %p52, %p53
    %p55 = scmp.ne.s32.totalorder %s47, %s49
    %p56 = scmp.eq.s32.totalorder %s18, 1
    %p57 = por %p55, %p56
    %p58 = scmp.ne.s32.totalorder %s49, %s50
    %p59 = scmp.eq.s32.totalorder %s18, 0
    %p60 = por %p58, %p59
    %p61 = scmp.ne.s32.totalorder %s49, %s50
    %p62 = scmp.eq.s32.totalorder %s19, 1
    %p63 = por %p61, %p62
    %p65 = scmp.ne.s32.totalorder %s50, %s64
    %p66 = scmp.eq.s32.totalorder %s19, 0
    %p67 = por %p65, %p66
    %s69 = sadd.s32 %s68, 1
    %p72 = scmp.eq.s32.totalorder %s13, 1
    %p73 = scmp.ne.s32.totalorder %s68, %s70
    %p74 = scmp.eq.s32.totalorder %s13, 0
    %p75 = por %p73, %p74
    %p76 = scmp.ne.s32.totalorder %s68, %s70
    %p77 = scmp.eq.s32.totalorder %s18, 1
    %p78 = por %p76, %p77
    %p79 = scmp.ne.s32.totalorder %s70, %s71
    %p80 = scmp.eq.s32.totalorder %s18, 0
    %p81 = por %p79, %p80
    %p82 = scmp.ne.s32.totalorder %s70, %s71
    %p83 = scmp.eq.s32.totalorder %s19, 1
    %p84 = por %p82, %p83
    %p86 = scmp.ne.s32.totalorder %s71, %s85
    %p87 = scmp.eq.s32.totalorder %s19, 0
    %p88 = por %p86, %p87
    %s90 = sadd.s32 %s89, 1
    %p93 = scmp.eq.s32.totalorder %s13, 1
    %p94 = scmp.ne.s32.totalorder %s89, %s91
    %p95 = scmp.eq.s32.totalorder %s13, 0
    %p96 = por %p94, %p95
    %p97 = scmp.ne.s32.totalorder %s89, %s91
    %p98 = scmp.eq.s32.totalorder %s18, 1
    %p99 = por %p97, %p98
    %p100 = scmp.ne.s32.totalorder %s91, %s92
    %p101 = scmp.eq.s32.totalorder %s18, 0
    %p102 = por %p100, %p101
    %p103 = scmp.ne.s32.totalorder %s91, %s92
    %p104 = scmp.eq.s32.totalorder %s19, 1
    %p105 = por %p103, %p104
    %p107 = scmp.ne.s32.totalorder %s92, %s106
    %p108 = scmp.eq.s32.totalorder %s19, 0
    %p109 = por %p107, %p108
    %s111 = sadd.s32 %s110, 1
    %p114 = scmp.eq.s32.totalorder %s13, 1
    %p115 = scmp.ne.s32.totalorder %s110, %s112
    %p116 = scmp.eq.s32.totalorder %s13, 0
    %p117 = por %p115, %p116
    %p118 = scmp.ne.s32.totalorder %s110, %s112
    %p119 = scmp.eq.s32.totalorder %s18, 1
    %p120 = por %p118, %p119
    %p121 = scmp.ne.s32.totalorder %s112, %s113
    %p122 = scmp.eq.s32.totalorder %s18, 0
    %p123 = por %p121, %p122
    %p124 = scmp.ne.s32.totalorder %s112, %s113
    %p125 = scmp.eq.s32.totalorder %s19, 1
    %p126 = por %p124, %p125
    %p128 = scmp.ne.s32.totalorder %s113, %s127
    %p129 = scmp.eq.s32.totalorder %s19, 0
    %p130 = por %p128, %p129
    %s131 = ssub.s32 %s13, %s20
    %p132 = scmp.eq.s32.totalorder %s131, 0
    %s134 = sadd.s32 %s133, 1
    %s135 = scalar_select %p132, %s133, %s134
    %p138 = pneg %p132
    %p139 = scmp.eq.s32.totalorder %s13, 1
    %p140 = por %p138, %p139
    %p141 = scmp.ne.s32.totalorder %s133, %s136
    %p142 = scmp.eq.s32.totalorder %s13, 0
    %p143 = por %p141, %p142
    %p144 = scmp.ne.s32.totalorder %s133, %s136
    %p145 = scmp.eq.s32.totalorder %s18, 1
    %p146 = por %p144, %p145
    %p147 = scmp.ne.s32.totalorder %s136, %s137
    %p148 = scmp.eq.s32.totalorder %s18, 0
    %p149 = por %p147, %p148
    %p150 = scmp.ne.s32.totalorder %s136, %s137
    %p151 = scmp.eq.s32.totalorder %s19, 1
    %p152 = por %p150, %p151
    %p154 = scmp.ne.s32.totalorder %s137, %s153
    %p155 = scmp.eq.s32.totalorder %s19, 0
    %p156 = por %p154, %p155
    %s157 = ssub.s32 %s13, %s20
    %p158 = scmp.eq.s32.totalorder %s157, 0
    %s160 = sadd.s32 %s159, 1
    %s161 = scalar_select %p158, %s159, %s160
    %p164 = pneg %p158
    %p165 = scmp.eq.s32.totalorder %s13, 1
    %p166 = por %p164, %p165
    %p167 = scmp.ne.s32.totalorder %s159, %s162
    %p168 = scmp.eq.s32.totalorder %s13, 0
    %p169 = por %p167, %p168
    %p170 = scmp.ne.s32.totalorder %s159, %s162
    %p171 = scmp.eq.s32.totalorder %s18, 1
    %p172 = por %p170, %p171
    %p173 = scmp.ne.s32.totalorder %s162, %s163
    %p174 = scmp.eq.s32.totalorder %s18, 0
    %p175 = por %p173, %p174
    %p176 = scmp.ne.s32.totalorder %s162, %s163
    %p177 = scmp.eq.s32.totalorder %s19, 1
    %p178 = por %p176, %p177
    %p180 = scmp.ne.s32.totalorder %s163, %s179
    %p181 = scmp.eq.s32.totalorder %s19, 0
    %p182 = por %p180, %p181
    %p183 = scmp.le.s32.totalorder 1, %s13
    %p184 = scmp.lt.s32.totalorder %s13, 3
    %p185 = pnand %p183, %p184
    %p186 = pneg %p185
    // Predicated region
    $region9: #{res_conv_forward.6} parent=5 // pred_check
      _
    $region10: #{res_conv_forward.6} parent=5 // pred_check_branch
      %188 = sbr.rel (%p185) target = $region12
    $region11: #{res_conv_forward.6} parent=5 // pred_region
      %s189 = ssub.s32 %s13, 1
      // Predicated region
      $region13: #{res_conv_forward.6} parent=11 // pred_check
        %p190 = pneg %p60
      $region14: #{res_conv_forward.6} parent=11 // pred_check_branch
        %192 = sbr.rel (%p190) target = $region16
      $region15: #{res_conv_forward.6} parent=11 // pred_region
        _
      $region16: #{res_conv_forward.6} parent=11 // pred_fallthru
        _
      // Predicated region
      $region17: #{res_conv_forward.6} parent=11 // pred_check
        %p193 = pneg %p81
      $region18: #{res_conv_forward.6} parent=11 // pred_check_branch
        %195 = sbr.rel (%p193) target = $region20
      $region19: #{res_conv_forward.6} parent=11 // pred_region
        _
      $region20: #{res_conv_forward.6} parent=11 // pred_fallthru
        _
      // Predicated region
      $region21: #{res_conv_forward.6} parent=11 // pred_check
        %p196 = pneg %p102
      $region22: #{res_conv_forward.6} parent=11 // pred_check_branch
        %198 = sbr.rel (%p196) target = $region24
      $region23: #{res_conv_forward.6} parent=11 // pred_region
        _
      $region24: #{res_conv_forward.6} parent=11 // pred_fallthru
        _
      // Predicated region
      $region25: #{res_conv_forward.6} parent=11 // pred_check
        %p199 = pneg %p123
      $region26: #{res_conv_forward.6} parent=11 // pred_check_branch
        %201 = sbr.rel (%p199) target = $region28
      $region27: #{res_conv_forward.6} parent=11 // pred_region
        _
      $region28: #{res_conv_forward.6} parent=11 // pred_fallthru
        _
    $region12: #{res_conv_forward.6} parent=5 // pred_fallthru
      _
    %p202 = scmp.lt.s32.totalorder %s13, 2
    // Predicated region
    $region29: #{res_conv_forward.6} parent=5 // pred_check
      %p203 = pneg %p202
    $region30: #{res_conv_forward.6} parent=5 // pred_check_branch
      %205 = sbr.rel (%p203) target = $region32
    $region31: #{res_conv_forward.6} parent=5 // pred_region
      // Predicated region
      $region33: #{res_conv_forward.6} parent=31 // pred_check
        %p206 = pneg %p33
      $region34: #{res_conv_forward.6} parent=31 // pred_check_branch
        %208 = sbr.rel (%p206) target = $region36
      $region35: #{res_conv_forward.6} parent=31 // pred_region
        %p209 = scmp.lt.s32.totalorder %s13, 1
        %s210 = scalar_select %p209, %s13, 1
        %s211 = smul.addr %s210, 8
        %s212 = scalar_lea.vmem %s0, %s211
      $region36: #{res_conv_forward.6} parent=31 // pred_fallthru
        _
    $region32: #{res_conv_forward.6} parent=5 // pred_fallthru
      _
    %p213 = scmp.le.s32.totalorder 1, %s13
    %p214 = scmp.lt.s32.totalorder %s13, 3
    %p215 = pnand %p213, %p214
    %p216 = pneg %p215
    // Predicated region
    $region37: #{res_conv_forward.6} parent=5 // pred_check
      _
    $region38: #{res_conv_forward.6} parent=5 // pred_check_branch
      %218 = sbr.rel (%p215) target = $region40
    $region39: #{res_conv_forward.6} parent=5 // pred_region
      %s219 = ssub.s32 %s13, 1
      %p220 = scmp.lt.s32.totalorder %s18, 1
      %s221 = scalar_select %p220, %s18, 1
      %s222 = smul.addr %s221, 8
      %s223 = scalar_lea.vmem %s0, %s222
      %p224 = pneg %p39
      %p225 = pneg %p36
      %p226 = pneg %p60
      %p227 = pneg %p57
      %p228 = pneg %p81
      %p229 = pneg %p78
      %p230 = pneg %p102
      %p231 = pneg %p99
      %p232 = pneg %p123
      %p233 = pneg %p120
      %p234 = pneg %p149
      %p235 = pneg %p146
      %p236 = scmp.lt.s32.totalorder %s18, 1
      %s237 = scalar_select %p236, %s18, 1
      %s238 = smul.addr %s237, 8
      %s239 = scalar_lea.vmem %s5, %s238
      %p240 = pneg %p175
      %p241 = pneg %p172
      %p242 = scmp.lt.s32.totalorder %s18, 1
      %s243 = scalar_select %p242, %s18, 1
      %s244 = smul.addr %s243, 2
      %s245 = scalar_lea.vmem %s6, %s244
      %p246 = scmp.lt.s32.totalorder %s18, 1
      %s247 = scalar_select %p246, %s18, 1
      %s248 = smul.addr %s247, 8
      %s249 = scalar_lea.vmem %s0, %s248
      %p250 = scmp.lt.s32.totalorder %s18, 1
      %s251 = scalar_select %p250, %s18, 1
      %s252 = smul.addr %s251, 8
      %s253 = scalar_lea.vmem %s5, %s252
      %p254 = scmp.lt.s32.totalorder %s18, 1
      %s255 = scalar_select %p254, %s18, 1
      %s256 = smul.addr %s255, 2
      %s257 = scalar_lea.vmem %s6, %s256
      %v259 = vld [vmem:[%s249] sm:$0xff]
      %v260 = vld [vmem:[%s1] sm:$0x1]
      %v262 = vperm.slane %v260, 0
      %v264 = vmul.f32 %v259, %v262
      %v265 = vld [vmem:[%s2] sm:$0x1]
      %v267 = vperm.slane %v265, 0
      %v269 = vadd.f32 %v264, %v267
      %v270 = vmax.f32 %v269, 0.0
      %v271 = vpack.c.bf16 %v270, %v270
      %v273 = vunpack.c.l.b16 %v271
      %v274 = vpack.c.b16 %v273, %v273
      %v276 = vshrl.u32 %v274, 16
      %v278 = vrot.slane %v276, 7
      %v279 = vshll.u32 %v274, 16
      %v281 = vor.u32 %v278, %v279
      %vm283 = vcmask 1040384
      %vm284 = vsmask.f32 256
      %vm285 = vmand %vm283, %vm284
      %v286 = vsel %vm285, 0, %v281
      %vm287 = vcmask 1044480
      %vm288 = vsmask.f32 4352
      %vm289 = vmand %vm287, %vm288
      %v290 = vsel %vm289, %v286, 0
      %v292 = vshrl.u32 %v290, 16
      %v294 = vshll.u32 %v290, 16
      %v296 = vrot.slane %v294, 1
      %v297 = vor.u32 %v292, %v296
      %v300 = vrot.slane %v290, 1
      %v302 = vld [vmem:[%s3] sm:$0xf]
      %v303 = vld [vmem:[%s3 + $0x4] sm:$0xf]
      %v304 = vld [vmem:[%s3 + $0x8] sm:$0xf]
      %v305 = vld [vmem:[%s3 + $0xc] sm:$0xf]
      %v306 = vld [vmem:[%s3 + $0x10] sm:$0xf]
      %v307 = vld [vmem:[%s3 + $0x14] sm:$0xf]
      %v308 = vld [vmem:[%s3 + $0x18] sm:$0xf]
      %v309 = vld [vmem:[%s3 + $0x1c] sm:$0xf]
      %v310 = vld [vmem:[%s3 + $0x20] sm:$0xf]
      %v311 = vld [vmem:[%s3 + $0x24] sm:$0xf]
      %v312 = vld [vmem:[%s3 + $0x28] sm:$0xf]
      %v313 = vld [vmem:[%s3 + $0x2c] sm:$0xf]
      %v314 = vld [vmem:[%s3 + $0x30] sm:$0xf]
      %v315 = vld [vmem:[%s3 + $0x34] sm:$0xf]
      %v316 = vld [vmem:[%s3 + $0x38] sm:$0xf]
      %v317 = vld [vmem:[%s3 + $0x3c] sm:$0xf]
      %v318 = vld [vmem:[%s3 + $0x40] sm:$0xf]
      %v319 = vld [vmem:[%s3 + $0x44] sm:$0xf]
      %v320 = vld [vmem:[%s3 + $0x48] sm:$0xf]
      %v321 = vld [vmem:[%s3 + $0x4c] sm:$0xf]
      %v322 = vld [vmem:[%s3 + $0x50] sm:$0xf]
      %v323 = vld [vmem:[%s3 + $0x54] sm:$0xf]
      %v324 = vld [vmem:[%s3 + $0x58] sm:$0xf]
      %v325 = vld [vmem:[%s3 + $0x5c] sm:$0xf]
      %v326 = vld [vmem:[%s3 + $0x60] sm:$0xf]
      %v327 = vld [vmem:[%s3 + $0x64] sm:$0xf]
      %v328 = vld [vmem:[%s3 + $0x68] sm:$0xf]
      %v329 = vld [vmem:[%s3 + $0x6c] sm:$0xf]
      %v330 = vld [vmem:[%s3 + $0x70] sm:$0xf]
      %v331 = vld [vmem:[%s3 + $0x74] sm:$0xf]
      %v332 = vld [vmem:[%s3 + $0x78] sm:$0xf]
      %v333 = vld [vmem:[%s3 + $0x7c] sm:$0xf]
      %v334 = vld [vmem:[%s3 + $0x80] sm:$0xf]
      %v335 = vld [vmem:[%s3 + $0x84] sm:$0xf]
      %v336 = vld [vmem:[%s3 + $0x88] sm:$0xf]
      %v337 = vld [vmem:[%s3 + $0x8c] sm:$0xf]
      %v338 = vld [vmem:[%s3 + $0x90] sm:$0xf]
      %v339 = vld [vmem:[%s3 + $0x94] sm:$0xf]
      %v340 = vld [vmem:[%s3 + $0x98] sm:$0xf]
      %v341 = vld [vmem:[%s3 + $0x9c] sm:$0xf]
      %v342 = vld [vmem:[%s3 + $0xa0] sm:$0xf]
      %v343 = vld [vmem:[%s3 + $0xa4] sm:$0xf]
      %v344 = vld [vmem:[%s3 + $0xa8] sm:$0xf]
      %v345 = vld [vmem:[%s3 + $0xac] sm:$0xf]
      %v346 = vld [vmem:[%s3 + $0xb0] sm:$0xf]
      %v347 = vld [vmem:[%s3 + $0xb4] sm:$0xf]
      %v348 = vld [vmem:[%s3 + $0xb8] sm:$0xf]
      %v349 = vld [vmem:[%s3 + $0xbc] sm:$0xf]
      %v350 = vld [vmem:[%s4] sm:$0x1]
      %v352 = vperm.slane %v350, 0
      %v402 = vunpack.c.l.b16 %v302
      %v403 = vunpack.c.l.b16 %v303
      %v404 = vunpack.c.l.b16 %v304
      %v405 = vunpack.c.l.b16 %v305
      %v406 = vunpack.c.l.b16 %v306
      %v407 = vunpack.c.l.b16 %v307
      %v408 = vunpack.c.l.b16 %v308
      %v409 = vunpack.c.l.b16 %v309
      %v410 = vunpack.c.l.b16 %v310
      %v411 = vunpack.c.l.b16 %v311
      %v412 = vunpack.c.l.b16 %v312
      %v413 = vunpack.c.l.b16 %v313
      %v414 = vunpack.c.l.b16 %v314
      %v415 = vunpack.c.l.b16 %v315
      %v416 = vunpack.c.l.b16 %v316
      %v417 = vunpack.c.l.b16 %v317
      %v418 = vunpack.c.l.b16 %v318
      %v419 = vunpack.c.l.b16 %v319
      %v420 = vunpack.c.l.b16 %v320
      %v421 = vunpack.c.l.b16 %v321
      %v422 = vunpack.c.l.b16 %v322
      %v423 = vunpack.c.l.b16 %v323
      %v424 = vunpack.c.l.b16 %v324
      %v425 = vunpack.c.l.b16 %v325
      %v426 = vunpack.c.l.b16 %v326
      %v427 = vunpack.c.l.b16 %v327
      %v428 = vunpack.c.l.b16 %v328
      %v429 = vunpack.c.l.b16 %v329
      %v430 = vunpack.c.l.b16 %v330
      %v431 = vunpack.c.l.b16 %v331
      %v432 = vunpack.c.l.b16 %v332
      %v433 = vunpack.c.l.b16 %v333
      %v434 = vunpack.c.l.b16 %v334
      %v435 = vunpack.c.l.b16 %v335
      %v436 = vunpack.c.l.b16 %v336
      %v437 = vunpack.c.l.b16 %v337
      %v438 = vunpack.c.l.b16 %v338
      %v439 = vunpack.c.l.b16 %v339
      %v440 = vunpack.c.l.b16 %v340
      %v441 = vunpack.c.l.b16 %v341
      %v442 = vunpack.c.l.b16 %v342
      %v443 = vunpack.c.l.b16 %v343
      %v444 = vunpack.c.l.b16 %v344
      %v445 = vunpack.c.l.b16 %v345
      %v446 = vunpack.c.l.b16 %v346
      %v447 = vunpack.c.l.b16 %v347
      %v448 = vunpack.c.l.b16 %v348
      %v449 = vunpack.c.l.b16 %v349
      %v450 = vpack.c.b16 %v403, %v402
      %v451 = vpack.c.b16 %v405, %v404
      %v452 = vpack.c.b16 %v407, %v406
      %v453 = vpack.c.b16 %v409, %v408
      %v454 = vpack.c.b16 %v411, %v410
      %v455 = vpack.c.b16 %v413, %v412
      %v456 = vpack.c.b16 %v415, %v414
      %v457 = vpack.c.b16 %v417, %v416
      %v458 = vpack.c.b16 %v419, %v418
      %v459 = vpack.c.b16 %v421, %v420
      %v460 = vpack.c.b16 %v423, %v422
      %v461 = vpack.c.b16 %v425, %v424
      %v462 = vpack.c.b16 %v427, %v426
      %v463 = vpack.c.b16 %v429, %v428
      %v464 = vpack.c.b16 %v431, %v430
      %v465 = vpack.c.b16 %v433, %v432
      %v466 = vpack.c.b16 %v435, %v434
      %v467 = vpack.c.b16 %v437, %v436
      %v468 = vpack.c.b16 %v439, %v438
      %v469 = vpack.c.b16 %v441, %v440
      %v470 = vpack.c.b16 %v443, %v442
      %v471 = vpack.c.b16 %v445, %v444
      %v472 = vpack.c.b16 %v447, %v446
      %v473 = vpack.c.b16 %v449, %v448
      %498 = vmatpush.bf16.msra.mxu0 %v457
      %499 = vmatpush.bf16.msra.mxu0 %v456
      %500 = vmatpush.bf16.msra.mxu0 %v455
      %501 = vmatpush.bf16.msra.mxu0 %v454
      %502 = vmatpush.bf16.msra.mxu0 %v453
      %503 = vmatpush.bf16.msra.mxu0 %v452
      %504 = vmatpush.bf16.msra.mxu0 %v451
      %505 = vmatpush.bf16.msra.mxu0 %v450
      %506 = vmatmul.bf16.gmra.mxu0 %v290
      %v507 = vpop.f32.mrf.mxu0
      %v508 = vadd.f32 %v352, %v507
      %v509 = vpop.f32.mrf.mxu0
      %510 = vdwg.mxu0
      %511 = vmatpush.bf16.msra.mxu0 %v465
      %512 = vmatpush.bf16.msra.mxu0 %v464
      %513 = vmatpush.bf16.msra.mxu0 %v463
      %514 = vmatpush.bf16.msra.mxu0 %v462
      %515 = vmatpush.bf16.msra.mxu0 %v461
      %516 = vmatpush.bf16.msra.mxu0 %v460
      %517 = vmatpush.bf16.msra.mxu0 %v459
      %518 = vmatpush.bf16.msra.mxu0 %v458
      %519 = vmatmul.bf16.gmra.mxu0 %v297
      %v520 = vpop.f32.mrf.mxu0
      %v521 = vadd.f32 %v508, %v520
      %v522 = vpop.f32.mrf.mxu0
      %523 = vdwg.mxu0
      %524 = vmatpush.bf16.msra.mxu0 %v473
      %525 = vmatpush.bf16.msra.mxu0 %v472
      %526 = vmatpush.bf16.msra.mxu0 %v471
      %527 = vmatpush.bf16.msra.mxu0 %v470
      %528 = vmatpush.bf16.msra.mxu0 %v469
      %529 = vmatpush.bf16.msra.mxu0 %v468
      %530 = vmatpush.bf16.msra.mxu0 %v467
      %531 = vmatpush.bf16.msra.mxu0 %v466
      %532 = vmatmul.bf16.gmra.mxu0 %v300
      %v533 = vpop.f32.mrf.mxu0
      %v534 = vadd.f32 %v521, %v533
      %v535 = vpop.f32.mrf.mxu0
      %536 = vdwg.mxu0
      %537 = vst [vmem:[%s253] sm:$0xff] %v534
      %v538 = vrot.slane %v534, 4
      %v539 = vadd.f32 %v534, %v538
      %v540 = vrot.slane %v539, 2
      %v541 = vadd.f32 %v539, %v540
      %v542 = vrot.slane %v541, 1
      %v543 = vadd.f32 %v541, %v542
      %v544 = vmul.f32 %v534, %v534
      %v545 = vrot.slane %v544, 4
      %v546 = vadd.f32 %v544, %v545
      %v547 = vrot.slane %v546, 2
      %v548 = vadd.f32 %v546, %v547
      %v549 = vrot.slane %v548, 1
      %v550 = vadd.f32 %v548, %v549
      %vm551 = vcmask 1040384
      %v552 = vsel %vm551, %v543, %v550
      %553 = vst [vmem:[%s257] sm:$0x3] %v552
      %p554 = scmp.lt.s32.totalorder %s18, 1
      %s555 = scalar_select %p554, %s18, 1
      %s556 = smul.addr %s555, 8
      %s557 = scalar_lea.vmem %s5, %s556
      %p558 = scmp.lt.s32.totalorder %s18, 1
      %s559 = scalar_select %p558, %s18, 1
      %s560 = smul.addr %s559, 2
      %s561 = scalar_lea.vmem %s6, %s560
      // Predicated region
      $region41: #{res_conv_forward.6} parent=39 // pred_check
        %p562 = pneg %p146
      $region42: #{res_conv_forward.6} parent=39 // pred_check_branch
        %564 = sbr.rel (%p562) target = $region44
      $region43: #{res_conv_forward.6} parent=39 // pred_region
        _
      $region44: #{res_conv_forward.6} parent=39 // pred_fallthru
        _
      // Predicated region
      $region45: #{res_conv_forward.6} parent=39 // pred_check
        %p565 = pneg %p172
      $region46: #{res_conv_forward.6} parent=39 // pred_check_branch
        %567 = sbr.rel (%p565) target = $region48
      $region47: #{res_conv_forward.6} parent=39 // pred_region
        _
      $region48: #{res_conv_forward.6} parent=39 // pred_fallthru
        _
    $region40: #{res_conv_forward.6} parent=5 // pred_fallthru
      _
    %p568 = scmp.le.s32.totalorder 2, %s13
    // Predicated region
    $region49: #{res_conv_forward.6} parent=5 // pred_check
      %p569 = pneg %p568
    $region50: #{res_conv_forward.6} parent=5 // pred_check_branch
      %571 = sbr.rel (%p569) target = $region52
    $region51: #{res_conv_forward.6} parent=5 // pred_region
      %s572 = ssub.s32 %s13, 2
      // Predicated region
      $region53: #{res_conv_forward.6} parent=51 // pred_check
        %p573 = pneg %p152
      $region54: #{res_conv_forward.6} parent=51 // pred_check_branch
        %575 = sbr.rel (%p573) target = $region56
      $region55: #{res_conv_forward.6} parent=51 // pred_region
        %p576 = scmp.lt.s32.totalorder %s19, 1
        %s577 = scalar_select %p576, %s19, 1
        %s578 = smul.addr %s577, 8
        %s579 = scalar_lea.vmem %s5, %s578
      $region56: #{res_conv_forward.6} parent=51 // pred_fallthru
        _
      // Predicated region
      $region57: #{res_conv_forward.6} parent=51 // pred_check
        %p580 = pneg %p178
      $region58: #{res_conv_forward.6} parent=51 // pred_check_branch
        %582 = sbr.rel (%p580) target = $region60
      $region59: #{res_conv_forward.6} parent=51 // pred_region
        %p583 = scmp.lt.s32.totalorder %s19, 1
        %s584 = scalar_select %p583, %s19, 1
        %s585 = smul.addr %s584, 2
        %s586 = scalar_lea.vmem %s6, %s585
      $region60: #{res_conv_forward.6} parent=51 // pred_fallthru
        _
    $region52: #{res_conv_forward.6} parent=5 // pred_fallthru
      _
  $region6: #{res_conv_forward.6} parent=0 // loop_footer
    %s17 = sadd.s32 1, %s13
  $region7: #{res_conv_forward.6} parent=0 // loop_footer_branch
    %12 = sbr.rel target = $region3
  $region8: #{res_conv_forward.6} parent=0 // loop_exit
    _

// kernel: res_conv_forward.7
$region0: #{res_conv_forward.7}
  #allocation0 [shape = 'u32[]', space=smem, size = 0x4, offset = 0x4, fixed_abs, tag = 'smem constant byte address 0x4 - core index']
  #allocation1 [shape = 'u32[72,128]{1,0:T(1,128)}', space=vmem, size = 0x9000, scoped, tag = 'internal scratch']
  %s0 = inlined_call_operand.vmem [shape: f32[2,8,128], index: 0, kind: input, shape index: {}]
  %s1 = inlined_call_operand.vmem [shape: f32[1,128], index: 1, kind: input, shape index: {}]
  %s2 = inlined_call_operand.vmem [shape: f32[1,128], index: 2, kind: input, shape index: {}]
  %s3 = inlined_call_operand.vmem [shape: bf16[2,2,8,128], index: 3, kind: input, shape index: {}]
  %s4 = inlined_call_operand.vmem [shape: bf16[128,128], index: 4, kind: input, shape index: {}]
  %s5 = inlined_call_operand.vmem [shape: f32[1,128], index: 5, kind: input, shape index: {}]
  %s6 = inlined_call_operand.vmem [shape: bf16[384,128], index: 6, kind: input, shape index: {}]
  %s7 = inlined_call_operand.vmem [shape: f32[1,128], index: 7, kind: input, shape index: {}]
  %s8 = inlined_call_operand.vmem [shape: f32[2,8,128], index: 8, kind: output, shape index: {0}]
  %s9 = inlined_call_operand.vmem [shape: f32[2,8,128], index: 9, kind: output, shape index: {1}]
  %s10 = inlined_call_operand.vmem [shape: f32[2,2,128], index: 10, kind: output, shape index: {2}]
  %11 = xla_tuple %s8, %s9, %s10
  %s12 = sld [smem:[#allocation0]]
  $region81: #{res_conv_forward.7} parent=0
    _
  %s14 = ssub.s32 1, %s12
  %s15 = scalar_select 0, %s14, %s12
  loop: start=0, step=1, limit=4
  $region2: #{res_conv_forward.7} parent=0 // loop_pre_header
    _
  $region3: #{res_conv_forward.7} parent=0 // loop_header
    %s17 = sphi 0, %s21
    %p18 = scmp.ge.s32.totalorder %s17, 4
    %s27 = sphi 0, %s29
    %s30 = sphi 0, %s27
    %s31 = sphi 0, %s30
    %s47 = sphi 0, %s31
    %s51 = sphi 0, %s51
    %s53 = sphi 0, %s51
    %s54 = sphi 0, %s53
    %s68 = sphi 0, %s54
    %s72 = sphi 0, %s72
    %s74 = sphi 0, %s72
    %s75 = sphi 0, %s74
    %s89 = sphi 0, %s75
    %s95 = sphi 0, %s97
    %s98 = sphi 0, %s95
    %s99 = sphi 0, %s98
    %s115 = sphi 0, %s99
    %s119 = sphi 0, %s119
    %s121 = sphi 0, %s119
    %s122 = sphi 0, %s121
    %s136 = sphi 0, %s122
    %s140 = sphi 0, %s140
    %s142 = sphi 0, %s140
    %s143 = sphi 0, %s142
    %s157 = sphi 0, %s143
    %s161 = sphi 0, %s161
    %s163 = sphi 0, %s161
    %s164 = sphi 0, %s163
    %s178 = sphi 0, %s164
    %s182 = sphi 0, %s182
    %s184 = sphi 0, %s182
    %s185 = sphi 0, %s184
    %s199 = sphi 0, %s185
    %s205 = sphi 0, %s207
    %s208 = sphi 0, %s205
    %s209 = sphi 0, %s208
    %s225 = sphi 0, %s209
    %s231 = sphi 0, %s233
    %s234 = sphi 0, %s231
    %s235 = sphi 0, %s234
    %s251 = sphi 0, %s235
    %s257 = sphi 0, %s259
    %s260 = sphi 0, %s257
    %s261 = sphi 0, %s260
    %s277 = sphi 0, %s261
  $region4: #{res_conv_forward.7} parent=0 // loop_header_branch
    %20 = sbr.rel (%p18) target = $region8
  $region5: #{res_conv_forward.7} parent=0 // loop_body
    %s22 = ssub.s32 %s17, 1
    %s23 = ssub.s32 %s17, 2
    %s24 = sadd.s32 %s17, 1
    %s25 = ssub.s32 %s17, %s24
    %p26 = scmp.eq.s32.totalorder %s25, 0
    %s28 = sadd.s32 %s27, 1
    %s29 = scalar_select %p26, %s27, %s28
    %p32 = pneg %p26
    %p33 = scmp.eq.s32.totalorder %s17, 1
    %p34 = por %p32, %p33
    %p35 = scmp.ne.s32.totalorder %s27, %s30
    %p36 = scmp.eq.s32.totalorder %s17, 0
    %p37 = por %p35, %p36
    %p38 = scmp.ne.s32.totalorder %s27, %s30
    %p39 = scmp.eq.s32.totalorder %s22, 1
    %p40 = por %p38, %p39
    %p41 = scmp.ne.s32.totalorder %s30, %s31
    %p42 = scmp.eq.s32.totalorder %s22, 0
    %p43 = por %p41, %p42
    %p44 = scmp.ne.s32.totalorder %s30, %s31
    %p45 = scmp.eq.s32.totalorder %s23, 1
    %p46 = por %p44, %p45
    %p48 = scmp.ne.s32.totalorder %s31, %s47
    %p49 = scmp.eq.s32.totalorder %s23, 0
    %p50 = por %p48, %p49
    %s52 = sadd.s32 %s51, 1
    %p55 = scmp.eq.s32.totalorder %s17, 1
    %p56 = scmp.ne.s32.totalorder %s51, %s53
    %p57 = scmp.eq.s32.totalorder %s17, 0
    %p58 = por %p56, %p57
    %p59 = scmp.ne.s32.totalorder %s51, %s53
    %p60 = scmp.eq.s32.totalorder %s22, 1
    %p61 = por %p59, %p60
    %p62 = scmp.ne.s32.totalorder %s53, %s54
    %p63 = scmp.eq.s32.totalorder %s22, 0
    %p64 = por %p62, %p63
    %p65 = scmp.ne.s32.totalorder %s53, %s54
    %p66 = scmp.eq.s32.totalorder %s23, 1
    %p67 = por %p65, %p66
    %p69 = scmp.ne.s32.totalorder %s54, %s68
    %p70 = scmp.eq.s32.totalorder %s23, 0
    %p71 = por %p69, %p70
    %s73 = sadd.s32 %s72, 1
    %p76 = scmp.eq.s32.totalorder %s17, 1
    %p77 = scmp.ne.s32.totalorder %s72, %s74
    %p78 = scmp.eq.s32.totalorder %s17, 0
    %p79 = por %p77, %p78
    %p80 = scmp.ne.s32.totalorder %s72, %s74
    %p81 = scmp.eq.s32.totalorder %s22, 1
    %p82 = por %p80, %p81
    %p83 = scmp.ne.s32.totalorder %s74, %s75
    %p84 = scmp.eq.s32.totalorder %s22, 0
    %p85 = por %p83, %p84
    %p86 = scmp.ne.s32.totalorder %s74, %s75
    %p87 = scmp.eq.s32.totalorder %s23, 1
    %p88 = por %p86, %p87
    %p90 = scmp.ne.s32.totalorder %s75, %s89
    %p91 = scmp.eq.s32.totalorder %s23, 0
    %p92 = por %p90, %p91
    %s93 = ssub.s32 %s17, %s24
    %p94 = scmp.eq.s32.totalorder %s93, 0
    %s96 = sadd.s32 %s95, 1
    %s97 = scalar_select %p94, %s95, %s96
    %p100 = pneg %p94
    %p101 = scmp.eq.s32.totalorder %s17, 1
    %p102 = por %p100, %p101
    %p103 = scmp.ne.s32.totalorder %s95, %s98
    %p104 = scmp.eq.s32.totalorder %s17, 0
    %p105 = por %p103, %p104
    %p106 = scmp.ne.s32.totalorder %s95, %s98
    %p107 = scmp.eq.s32.totalorder %s22, 1
    %p108 = por %p106, %p107
    %p109 = scmp.ne.s32.totalorder %s98, %s99
    %p110 = scmp.eq.s32.totalorder %s22, 0
    %p111 = por %p109, %p110
    %p112 = scmp.ne.s32.totalorder %s98, %s99
    %p113 = scmp.eq.s32.totalorder %s23, 1
    %p114 = por %p112, %p113
    %p116 = scmp.ne.s32.totalorder %s99, %s115
    %p117 = scmp.eq.s32.totalorder %s23, 0
    %p118 = por %p116, %p117
    %s120 = sadd.s32 %s119, 1
    %p123 = scmp.eq.s32.totalorder %s17, 1
    %p124 = scmp.ne.s32.totalorder %s119, %s121
    %p125 = scmp.eq.s32.totalorder %s17, 0
    %p126 = por %p124, %p125
    %p127 = scmp.ne.s32.totalorder %s119, %s121
    %p128 = scmp.eq.s32.totalorder %s22, 1
    %p129 = por %p127, %p128
    %p130 = scmp.ne.s32.totalorder %s121, %s122
    %p131 = scmp.eq.s32.totalorder %s22, 0
    %p132 = por %p130, %p131
    %p133 = scmp.ne.s32.totalorder %s121, %s122
    %p134 = scmp.eq.s32.totalorder %s23, 1
    %p135 = por %p133, %p134
    %p137 = scmp.ne.s32.totalorder %s122, %s136
    %p138 = scmp.eq.s32.totalorder %s23, 0
    %p139 = por %p137, %p138
    %s141 = sadd.s32 %s140, 1
    %p144 = scmp.eq.s32.totalorder %s17, 1
    %p145 = scmp.ne.s32.totalorder %s140, %s142
    %p146 = scmp.eq.s32.totalorder %s17, 0
    %p147 = por %p145, %p146
    %p148 = scmp.ne.s32.totalorder %s140, %s142
    %p149 = scmp.eq.s32.totalorder %s22, 1
    %p150 = por %p148, %p149
    %p151 = scmp.ne.s32.totalorder %s142, %s143
    %p152 = scmp.eq.s32.totalorder %s22, 0
    %p153 = por %p151, %p152
    %p154 = scmp.ne.s32.totalorder %s142, %s143
    %p155 = scmp.eq.s32.totalorder %s23, 1
    %p156 = por %p154, %p155
    %p158 = scmp.ne.s32.totalorder %s143, %s157
    %p159 = scmp.eq.s32.totalorder %s23, 0
    %p160 = por %p158, %p159
    %s162 = sadd.s32 %s161, 1
    %p165 = scmp.eq.s32.totalorder %s17, 1
    %p166 = scmp.ne.s32.totalorder %s161, %s163
    %p167 = scmp.eq.s32.totalorder %s17, 0
    %p168 = por %p166, %p167
    %p169 = scmp.ne.s32.totalorder %s161, %s163
    %p170 = scmp.eq.s32.totalorder %s22, 1
    %p171 = por %p169, %p170
    %p172 = scmp.ne.s32.totalorder %s163, %s164
    %p173 = scmp.eq.s32.totalorder %s22, 0
    %p174 = por %p172, %p173
    %p175 = scmp.ne.s32.totalorder %s163, %s164
    %p176 = scmp.eq.s32.totalorder %s23, 1
    %p177 = por %p175, %p176
    %p179 = scmp.ne.s32.totalorder %s164, %s178
    %p180 = scmp.eq.s32.totalorder %s23, 0
    %p181 = por %p179, %p180
    %s183 = sadd.s32 %s182, 1
    %p186 = scmp.eq.s32.totalorder %s17, 1
    %p187 = scmp.ne.s32.totalorder %s182, %s184
    %p188 = scmp.eq.s32.totalorder %s17, 0
    %p189 = por %p187, %p188
    %p190 = scmp.ne.s32.totalorder %s182, %s184
    %p191 = scmp.eq.s32.totalorder %s22, 1
    %p192 = por %p190, %p191
    %p193 = scmp.ne.s32.totalorder %s184, %s185
    %p194 = scmp.eq.s32.totalorder %s22, 0
    %p195 = por %p193, %p194
    %p196 = scmp.ne.s32.totalorder %s184, %s185
    %p197 = scmp.eq.s32.totalorder %s23, 1
    %p198 = por %p196, %p197
    %p200 = scmp.ne.s32.totalorder %s185, %s199
    %p201 = scmp.eq.s32.totalorder %s23, 0
    %p202 = por %p200, %p201
    %s203 = ssub.s32 %s17, %s24
    %p204 = scmp.eq.s32.totalorder %s203, 0
    %s206 = sadd.s32 %s205, 1
    %s207 = scalar_select %p204, %s205, %s206
    %p210 = pneg %p204
    %p211 = scmp.eq.s32.totalorder %s17, 1
    %p212 = por %p210, %p211
    %p213 = scmp.ne.s32.totalorder %s205, %s208
    %p214 = scmp.eq.s32.totalorder %s17, 0
    %p215 = por %p213, %p214
    %p216 = scmp.ne.s32.totalorder %s205, %s208
    %p217 = scmp.eq.s32.totalorder %s22, 1
    %p218 = por %p216, %p217
    %p219 = scmp.ne.s32.totalorder %s208, %s209
    %p220 = scmp.eq.s32.totalorder %s22, 0
    %p221 = por %p219, %p220
    %p222 = scmp.ne.s32.totalorder %s208, %s209
    %p223 = scmp.eq.s32.totalorder %s23, 1
    %p224 = por %p222, %p223
    %p226 = scmp.ne.s32.totalorder %s209, %s225
    %p227 = scmp.eq.s32.totalorder %s23, 0
    %p228 = por %p226, %p227
    %s229 = ssub.s32 %s17, %s24
    %p230 = scmp.eq.s32.totalorder %s229, 0
    %s232 = sadd.s32 %s231, 1
    %s233 = scalar_select %p230, %s231, %s232
    %p236 = pneg %p230
    %p237 = scmp.eq.s32.totalorder %s17, 1
    %p238 = por %p236, %p237
    %p239 = scmp.ne.s32.totalorder %s231, %s234
    %p240 = scmp.eq.s32.totalorder %s17, 0
    %p241 = por %p239, %p240
    %p242 = scmp.ne.s32.totalorder %s231, %s234
    %p243 = scmp.eq.s32.totalorder %s22, 1
    %p244 = por %p242, %p243
    %p245 = scmp.ne.s32.totalorder %s234, %s235
    %p246 = scmp.eq.s32.totalorder %s22, 0
    %p247 = por %p245, %p246
    %p248 = scmp.ne.s32.totalorder %s234, %s235
    %p249 = scmp.eq.s32.totalorder %s23, 1
    %p250 = por %p248, %p249
    %p252 = scmp.ne.s32.totalorder %s235, %s251
    %p253 = scmp.eq.s32.totalorder %s23, 0
    %p254 = por %p252, %p253
    %s255 = ssub.s32 %s17, %s24
    %p256 = scmp.eq.s32.totalorder %s255, 0
    %s258 = sadd.s32 %s257, 1
    %s259 = scalar_select %p256, %s257, %s258
    %p262 = pneg %p256
    %p263 = scmp.eq.s32.totalorder %s17, 1
    %p264 = por %p262, %p263
    %p265 = scmp.ne.s32.totalorder %s257, %s260
    %p266 = scmp.eq.s32.totalorder %s17, 0
    %p267 = por %p265, %p266
    %p268 = scmp.ne.s32.totalorder %s257, %s260
    %p269 = scmp.eq.s32.totalorder %s22, 1
    %p270 = por %p268, %p269
    %p271 = scmp.ne.s32.totalorder %s260, %s261
    %p272 = scmp.eq.s32.totalorder %s22, 0
    %p273 = por %p271, %p272
    %p274 = scmp.ne.s32.totalorder %s260, %s261
    %p275 = scmp.eq.s32.totalorder %s23, 1
    %p276 = por %p274, %p275
    %p278 = scmp.ne.s32.totalorder %s261, %s277
    %p279 = scmp.eq.s32.totalorder %s23, 0
    %p280 = por %p278, %p279
    %p281 = scmp.le.s32.totalorder 1, %s17
    %p282 = scmp.lt.s32.totalorder %s17, 3
    %p283 = pnand %p281, %p282
    %p284 = pneg %p283
    // Predicated region
    $region9: #{res_conv_forward.7} parent=5 // pred_check
      _
    $region10: #{res_conv_forward.7} parent=5 // pred_check_branch
      %286 = sbr.rel (%p283) target = $region12
    $region11: #{res_conv_forward.7} parent=5 // pred_region
      %s287 = ssub.s32 %s17, 1
      // Predicated region
      $region13: #{res_conv_forward.7} parent=11 // pred_check
        %p288 = pneg %p64
      $region14: #{res_conv_forward.7} parent=11 // pred_check_branch
        %290 = sbr.rel (%p288) target = $region16
      $region15: #{res_conv_forward.7} parent=11 // pred_region
        _
      $region16: #{res_conv_forward.7} parent=11 // pred_fallthru
        _
      // Predicated region
      $region17: #{res_conv_forward.7} parent=11 // pred_check
        %p291 = pneg %p85
      $region18: #{res_conv_forward.7} parent=11 // pred_check_branch
        %293 = sbr.rel (%p291) target = $region20
      $region19: #{res_conv_forward.7} parent=11 // pred_region
        _
      $region20: #{res_conv_forward.7} parent=11 // pred_fallthru
        _
      // Predicated region
      $region21: #{res_conv_forward.7} parent=11 // pred_check
        %p294 = pneg %p132
      $region22: #{res_conv_forward.7} parent=11 // pred_check_branch
        %296 = sbr.rel (%p294) target = $region24
      $region23: #{res_conv_forward.7} parent=11 // pred_region
        _
      $region24: #{res_conv_forward.7} parent=11 // pred_fallthru
        _
      // Predicated region
      $region25: #{res_conv_forward.7} parent=11 // pred_check
        %p297 = pneg %p153
      $region26: #{res_conv_forward.7} parent=11 // pred_check_branch
        %299 = sbr.rel (%p297) target = $region28
      $region27: #{res_conv_forward.7} parent=11 // pred_region
        _
      $region28: #{res_conv_forward.7} parent=11 // pred_fallthru
        _
      // Predicated region
      $region29: #{res_conv_forward.7} parent=11 // pred_check
        %p300 = pneg %p174
      $region30: #{res_conv_forward.7} parent=11 // pred_check_branch
        %302 = sbr.rel (%p300) target = $region32
      $region31: #{res_conv_forward.7} parent=11 // pred_region
        _
      $region32: #{res_conv_forward.7} parent=11 // pred_fallthru
        _
      // Predicated region
      $region33: #{res_conv_forward.7} parent=11 // pred_check
        %p303 = pneg %p195
      $region34: #{res_conv_forward.7} parent=11 // pred_check_branch
        %305 = sbr.rel (%p303) target = $region36
      $region35: #{res_conv_forward.7} parent=11 // pred_region
        _
      $region36: #{res_conv_forward.7} parent=11 // pred_fallthru
        _
    $region12: #{res_conv_forward.7} parent=5 // pred_fallthru
      _
    %p306 = scmp.lt.s32.totalorder %s17, 2
    // Predicated region
    $region37: #{res_conv_forward.7} parent=5 // pred_check
      %p307 = pneg %p306
    $region38: #{res_conv_forward.7} parent=5 // pred_check_branch
      %309 = sbr.rel (%p307) target = $region40
    $region39: #{res_conv_forward.7} parent=5 // pred_region
      // Predicated region
      $region41: #{res_conv_forward.7} parent=39 // pred_check
        %p310 = pneg %p37
      $region42: #{res_conv_forward.7} parent=39 // pred_check_branch
        %312 = sbr.rel (%p310) target = $region44
      $region43: #{res_conv_forward.7} parent=39 // pred_region
        %p313 = scmp.lt.s32.totalorder %s17, 1
        %s314 = scalar_select %p313, %s17, 1
        %s315 = smul.addr %s314, 8
        %s316 = scalar_lea.vmem %s0, %s315
      $region44: #{res_conv_forward.7} parent=39 // pred_fallthru
        _
      // Predicated region
      $region45: #{res_conv_forward.7} parent=39 // pred_check
        %p317 = pneg %p105
      $region46: #{res_conv_forward.7} parent=39 // pred_check_branch
        %319 = sbr.rel (%p317) target = $region48
      $region47: #{res_conv_forward.7} parent=39 // pred_region
        %p320 = scmp.lt.s32.totalorder %s17, 1
        %s321 = scalar_select %p320, %s17, 1
        %s322 = smul.addr %s321, 2
        %s323 = smul.addr %s322, 4
        %s324 = scalar_lea.vmem %s3, %s323
      $region48: #{res_conv_forward.7} parent=39 // pred_fallthru
        _
    $region40: #{res_conv_forward.7} parent=5 // pred_fallthru
      _
    %p325 = scmp.le.s32.totalorder 1, %s17
    %p326 = scmp.lt.s32.totalorder %s17, 3
    %p327 = pnand %p325, %p326
    %p328 = pneg %p327
    // Predicated region
    $region49: #{res_conv_forward.7} parent=5 // pred_check
      _
    $region50: #{res_conv_forward.7} parent=5 // pred_check_branch
      %330 = sbr.rel (%p327) target = $region52
    $region51: #{res_conv_forward.7} parent=5 // pred_region
      %s331 = ssub.s32 %s17, 1
      %p332 = scmp.lt.s32.totalorder %s22, 1
      %s333 = scalar_select %p332, %s22, 1
      %s334 = smul.addr %s333, 8
      %s335 = scalar_lea.vmem %s0, %s334
      %p336 = pneg %p43
      %p337 = pneg %p40
      %p338 = pneg %p64
      %p339 = pneg %p61
      %p340 = pneg %p85
      %p341 = pneg %p82
      %p342 = scmp.lt.s32.totalorder %s22, 1
      %s343 = scalar_select %p342, %s22, 1
      %s344 = smul.addr %s343, 2
      %s345 = smul.addr %s344, 4
      %s346 = scalar_lea.vmem %s3, %s345
      %p347 = pneg %p111
      %p348 = pneg %p108
      %p349 = pneg %p132
      %p350 = pneg %p129
      %p351 = pneg %p153
      %p352 = pneg %p150
      %p353 = pneg %p174
      %p354 = pneg %p171
      %p355 = pneg %p195
      %p356 = pneg %p192
      %p357 = pneg %p221
      %p358 = pneg %p218
      %p359 = scmp.lt.s32.totalorder %s22, 1
      %s360 = scalar_select %p359, %s22, 1
      %s361 = smul.addr %s360, 8
      %s362 = scalar_lea.vmem %s8, %s361
      %p363 = pneg %p247
      %p364 = pneg %p244
      %p365 = scmp.lt.s32.totalorder %s22, 1
      %s366 = scalar_select %p365, %s22, 1
      %s367 = smul.addr %s366, 8
      %s368 = scalar_lea.vmem %s9, %s367
      %p369 = pneg %p273
      %p370 = pneg %p270
      %p371 = scmp.lt.s32.totalorder %s22, 1
      %s372 = scalar_select %p371, %s22, 1
      %s373 = smul.addr %s372, 2
      %s374 = scalar_lea.vmem %s10, %s373
      %p375 = scmp.lt.s32.totalorder %s22, 1
      %s376 = scalar_select %p375, %s22, 1
      %s377 = smul.addr %s376, 8
      %s378 = scalar_lea.vmem %s0, %s377
      %p379 = scmp.lt.s32.totalorder %s22, 1
      %s380 = scalar_select %p379, %s22, 1
      %s381 = smul.addr %s380, 2
      %s382 = smul.addr %s381, 4
      %s383 = scalar_lea.vmem %s3, %s382
      %p384 = scmp.lt.s32.totalorder %s22, 1
      %s385 = scalar_select %p384, %s22, 1
      %s386 = smul.addr %s385, 8
      %s387 = scalar_lea.vmem %s8, %s386
      %p388 = scmp.lt.s32.totalorder %s22, 1
      %s389 = scalar_select %p388, %s22, 1
      %s390 = smul.addr %s389, 8
      %s391 = scalar_lea.vmem %s9, %s390
      %p392 = scmp.lt.s32.totalorder %s22, 1
      %s393 = scalar_select %p392, %s22, 1
      %s394 = smul.addr %s393, 2
      %s395 = scalar_lea.vmem %s10, %s394
      %v397 = vld [vmem:[%s378] sm:$0xff]
      %v398 = vld [vmem:[%s1] sm:$0x1]
      %v400 = vperm.slane %v398, 0
      %v402 = vmul.f32 %v397, %v400
      %v403 = vld [vmem:[%s2] sm:$0x1]
      %v405 = vperm.slane %v403, 0
      %v407 = vadd.f32 %v402, %v405
      %v408 = vld [vmem:[%s383] sm:$0xf]
      %v409 = vld [vmem:[%s383 + $0x4] sm:$0xf]
      %v410 = vunpack.c.l.bf16 %v408
      %v411 = vunpack.c.l.bf16 %v409
      %v412 = vmax.f32 %v410, %v411
      %v413 = vpack.c.bf16 %v412, %v412
      %v414 = vld [vmem:[%s4] sm:$0xf]
      %v415 = vld [vmem:[%s4 + $0x4] sm:$0xf]
      %v416 = vld [vmem:[%s4 + $0x8] sm:$0xf]
      %v417 = vld [vmem:[%s4 + $0xc] sm:$0xf]
      %v418 = vld [vmem:[%s4 + $0x10] sm:$0xf]
      %v419 = vld [vmem:[%s4 + $0x14] sm:$0xf]
      %v420 = vld [vmem:[%s4 + $0x18] sm:$0xf]
      %v421 = vld [vmem:[%s4 + $0x1c] sm:$0xf]
      %v422 = vld [vmem:[%s4 + $0x20] sm:$0xf]
      %v423 = vld [vmem:[%s4 + $0x24] sm:$0xf]
      %v424 = vld [vmem:[%s4 + $0x28] sm:$0xf]
      %v425 = vld [vmem:[%s4 + $0x2c] sm:$0xf]
      %v426 = vld [vmem:[%s4 + $0x30] sm:$0xf]
      %v427 = vld [vmem:[%s4 + $0x34] sm:$0xf]
      %v428 = vld [vmem:[%s4 + $0x38] sm:$0xf]
      %v429 = vld [vmem:[%s4 + $0x3c] sm:$0xf]
      %v430 = vld [vmem:[%s5] sm:$0x1]
      %v432 = vperm.slane %v430, 0
      %v450 = vunpack.c.l.b16 %v414
      %v451 = vunpack.c.l.b16 %v415
      %v452 = vunpack.c.l.b16 %v416
      %v453 = vunpack.c.l.b16 %v417
      %v454 = vunpack.c.l.b16 %v418
      %v455 = vunpack.c.l.b16 %v419
      %v456 = vunpack.c.l.b16 %v420
      %v457 = vunpack.c.l.b16 %v421
      %v458 = vunpack.c.l.b16 %v422
      %v459 = vunpack.c.l.b16 %v423
      %v460 = vunpack.c.l.b16 %v424
      %v461 = vunpack.c.l.b16 %v425
      %v462 = vunpack.c.l.b16 %v426
      %v463 = vunpack.c.l.b16 %v427
      %v464 = vunpack.c.l.b16 %v428
      %v465 = vunpack.c.l.b16 %v429
      %v466 = vpack.c.b16 %v451, %v450
      %v467 = vpack.c.b16 %v453, %v452
      %v468 = vpack.c.b16 %v455, %v454
      %v469 = vpack.c.b16 %v457, %v456
      %v470 = vpack.c.b16 %v459, %v458
      %v471 = vpack.c.b16 %v461, %v460
      %v472 = vpack.c.b16 %v463, %v462
      %v473 = vpack.c.b16 %v465, %v464
      %482 = vmatpush.bf16.msra.mxu0 %v473
      %483 = vmatpush.bf16.msra.mxu0 %v472
      %484 = vmatpush.bf16.msra.mxu0 %v471
      %485 = vmatpush.bf16.msra.mxu0 %v470
      %486 = vmatpush.bf16.msra.mxu0 %v469
      %487 = vmatpush.bf16.msra.mxu0 %v468
      %488 = vmatpush.bf16.msra.mxu0 %v467
      %489 = vmatpush.bf16.msra.mxu0 %v466
      %490 = vmatmul.bf16.gmra.mxu0 %v413
      %v491 = vpop.f32.mrf.mxu0
      %v492 = vadd.f32 %v432, %v491
      %v493 = vpop.f32.mrf.mxu0
      %494 = vdwg.mxu0
      %v495 = vadd.f32 %v407, %v492
      %v496 = vmax.f32 %v495, 0.0
      %497 = vst [vmem:[%s387] sm:$0xff] %v496
      %v498 = vpack.c.bf16 %v496, %v496
      %v500 = vunpack.c.l.b16 %v498
      %v501 = vpack.c.b16 %v500, %v500
      %v503 = vshrl.u32 %v501, 16
      %v505 = vrot.slane %v503, 7
      %v506 = vshll.u32 %v501, 16
      %v508 = vor.u32 %v505, %v506
      %vm510 = vcmask 1040384
      %vm511 = vsmask.f32 256
      %vm512 = vmand %vm510, %vm511
      %v513 = vsel %vm512, 0, %v508
      %vm514 = vcmask 1044480
      %vm515 = vsmask.f32 4352
      %vm516 = vmand %vm514, %vm515
      %v517 = vsel %vm516, %v513, 0
      %v519 = vshrl.u32 %v517, 16
      %v521 = vshll.u32 %v517, 16
      %v523 = vrot.slane %v521, 1
      %v524 = vor.u32 %v519, %v523
      %v527 = vrot.slane %v517, 1
      %v529 = vld [vmem:[%s6] sm:$0xf]
      %v530 = vld [vmem:[%s6 + $0x4] sm:$0xf]
      %v531 = vld [vmem:[%s6 + $0x8] sm:$0xf]
      %v532 = vld [vmem:[%s6 + $0xc] sm:$0xf]
      %v533 = vld [vmem:[%s6 + $0x10] sm:$0xf]
      %v534 = vld [vmem:[%s6 + $0x14] sm:$0xf]
      %v535 = vld [vmem:[%s6 + $0x18] sm:$0xf]
      %v536 = vld [vmem:[%s6 + $0x1c] sm:$0xf]
      %v537 = vld [vmem:[%s6 + $0x20] sm:$0xf]
      %v538 = vld [vmem:[%s6 + $0x24] sm:$0xf]
      %v539 = vld [vmem:[%s6 + $0x28] sm:$0xf]
      %v540 = vld [vmem:[%s6 + $0x2c] sm:$0xf]
      %v541 = vld [vmem:[%s6 + $0x30] sm:$0xf]
      %v542 = vld [vmem:[%s6 + $0x34] sm:$0xf]
      %v543 = vld [vmem:[%s6 + $0x38] sm:$0xf]
      %v544 = vld [vmem:[%s6 + $0x3c] sm:$0xf]
      %v545 = vld [vmem:[%s6 + $0x40] sm:$0xf]
      %v546 = vld [vmem:[%s6 + $0x44] sm:$0xf]
      %v547 = vld [vmem:[%s6 + $0x48] sm:$0xf]
      %v548 = vld [vmem:[%s6 + $0x4c] sm:$0xf]
      %v549 = vld [vmem:[%s6 + $0x50] sm:$0xf]
      %v550 = vld [vmem:[%s6 + $0x54] sm:$0xf]
      %v551 = vld [vmem:[%s6 + $0x58] sm:$0xf]
      %v552 = vld [vmem:[%s6 + $0x5c] sm:$0xf]
      %v553 = vld [vmem:[%s6 + $0x60] sm:$0xf]
      %v554 = vld [vmem:[%s6 + $0x64] sm:$0xf]
      %v555 = vld [vmem:[%s6 + $0x68] sm:$0xf]
      %v556 = vld [vmem:[%s6 + $0x6c] sm:$0xf]
      %v557 = vld [vmem:[%s6 + $0x70] sm:$0xf]
      %v558 = vld [vmem:[%s6 + $0x74] sm:$0xf]
      %v559 = vld [vmem:[%s6 + $0x78] sm:$0xf]
      %v560 = vld [vmem:[%s6 + $0x7c] sm:$0xf]
      %v561 = vld [vmem:[%s6 + $0x80] sm:$0xf]
      %v562 = vld [vmem:[%s6 + $0x84] sm:$0xf]
      %v563 = vld [vmem:[%s6 + $0x88] sm:$0xf]
      %v564 = vld [vmem:[%s6 + $0x8c] sm:$0xf]
      %v565 = vld [vmem:[%s6 + $0x90] sm:$0xf]
      %v566 = vld [vmem:[%s6 + $0x94] sm:$0xf]
      %v567 = vld [vmem:[%s6 + $0x98] sm:$0xf]
      %v568 = vld [vmem:[%s6 + $0x9c] sm:$0xf]
      %v569 = vld [vmem:[%s6 + $0xa0] sm:$0xf]
      %v570 = vld [vmem:[%s6 + $0xa4] sm:$0xf]
      %v571 = vld [vmem:[%s6 + $0xa8] sm:$0xf]
      %v572 = vld [vmem:[%s6 + $0xac] sm:$0xf]
      %v573 = vld [vmem:[%s6 + $0xb0] sm:$0xf]
      %v574 = vld [vmem:[%s6 + $0xb4] sm:$0xf]
      %v575 = vld [vmem:[%s6 + $0xb8] sm:$0xf]
      %v576 = vld [vmem:[%s6 + $0xbc] sm:$0xf]
      %v577 = vld [vmem:[%s7] sm:$0x1]
      %v579 = vperm.slane %v577, 0
      %v629 = vunpack.c.l.b16 %v529
      %v630 = vunpack.c.l.b16 %v530
      %v631 = vunpack.c.l.b16 %v531
      %v632 = vunpack.c.l.b16 %v532
      %v633 = vunpack.c.l.b16 %v533
      %v634 = vunpack.c.l.b16 %v534
      %v635 = vunpack.c.l.b16 %v535
      %v636 = vunpack.c.l.b16 %v536
      %v637 = vunpack.c.l.b16 %v537
      %v638 = vunpack.c.l.b16 %v538
      %v639 = vunpack.c.l.b16 %v539
      %v640 = vunpack.c.l.b16 %v540
      %v641 = vunpack.c.l.b16 %v541
      %v642 = vunpack.c.l.b16 %v542
      %v643 = vunpack.c.l.b16 %v543
      %v644 = vunpack.c.l.b16 %v544
      %v645 = vunpack.c.l.b16 %v545
      %v646 = vunpack.c.l.b16 %v546
      %v647 = vunpack.c.l.b16 %v547
      %v648 = vunpack.c.l.b16 %v548
      %v649 = vunpack.c.l.b16 %v549
      %v650 = vunpack.c.l.b16 %v550
      %v651 = vunpack.c.l.b16 %v551
      %v652 = vunpack.c.l.b16 %v552
      %v653 = vunpack.c.l.b16 %v553
      %v654 = vunpack.c.l.b16 %v554
      %v655 = vunpack.c.l.b16 %v555
      %v656 = vunpack.c.l.b16 %v556
      %v657 = vunpack.c.l.b16 %v557
      %v658 = vunpack.c.l.b16 %v558
      %v659 = vunpack.c.l.b16 %v559
      %v660 = vunpack.c.l.b16 %v560
      %v661 = vunpack.c.l.b16 %v561
      %v662 = vunpack.c.l.b16 %v562
      %v663 = vunpack.c.l.b16 %v563
      %v664 = vunpack.c.l.b16 %v564
      %v665 = vunpack.c.l.b16 %v565
      %v666 = vunpack.c.l.b16 %v566
      %v667 = vunpack.c.l.b16 %v567
      %v668 = vunpack.c.l.b16 %v568
      %v669 = vunpack.c.l.b16 %v569
      %v670 = vunpack.c.l.b16 %v570
      %v671 = vunpack.c.l.b16 %v571
      %v672 = vunpack.c.l.b16 %v572
      %v673 = vunpack.c.l.b16 %v573
      %v674 = vunpack.c.l.b16 %v574
      %v675 = vunpack.c.l.b16 %v575
      %v676 = vunpack.c.l.b16 %v576
      %v677 = vpack.c.b16 %v630, %v629
      %v678 = vpack.c.b16 %v632, %v631
      %v679 = vpack.c.b16 %v634, %v633
      %v680 = vpack.c.b16 %v636, %v635
      %v681 = vpack.c.b16 %v638, %v637
      %v682 = vpack.c.b16 %v640, %v639
      %v683 = vpack.c.b16 %v642, %v641
      %v684 = vpack.c.b16 %v644, %v643
      %v685 = vpack.c.b16 %v646, %v645
      %v686 = vpack.c.b16 %v648, %v647
      %v687 = vpack.c.b16 %v650, %v649
      %v688 = vpack.c.b16 %v652, %v651
      %v689 = vpack.c.b16 %v654, %v653
      %v690 = vpack.c.b16 %v656, %v655
      %v691 = vpack.c.b16 %v658, %v657
      %v692 = vpack.c.b16 %v660, %v659
      %v693 = vpack.c.b16 %v662, %v661
      %v694 = vpack.c.b16 %v664, %v663
      %v695 = vpack.c.b16 %v666, %v665
      %v696 = vpack.c.b16 %v668, %v667
      %v697 = vpack.c.b16 %v670, %v669
      %v698 = vpack.c.b16 %v672, %v671
      %v699 = vpack.c.b16 %v674, %v673
      %v700 = vpack.c.b16 %v676, %v675
      %725 = vmatpush.bf16.msra.mxu0 %v684
      %726 = vmatpush.bf16.msra.mxu0 %v683
      %727 = vmatpush.bf16.msra.mxu0 %v682
      %728 = vmatpush.bf16.msra.mxu0 %v681
      %729 = vmatpush.bf16.msra.mxu0 %v680
      %730 = vmatpush.bf16.msra.mxu0 %v679
      %731 = vmatpush.bf16.msra.mxu0 %v678
      %732 = vmatpush.bf16.msra.mxu0 %v677
      %733 = vmatmul.bf16.gmra.mxu0 %v517
      %v734 = vpop.f32.mrf.mxu0
      %v735 = vadd.f32 %v579, %v734
      %v736 = vpop.f32.mrf.mxu0
      %737 = vdwg.mxu0
      %738 = vmatpush.bf16.msra.mxu0 %v692
      %739 = vmatpush.bf16.msra.mxu0 %v691
      %740 = vmatpush.bf16.msra.mxu0 %v690
      %741 = vmatpush.bf16.msra.mxu0 %v689
      %742 = vmatpush.bf16.msra.mxu0 %v688
      %743 = vmatpush.bf16.msra.mxu0 %v687
      %744 = vmatpush.bf16.msra.mxu0 %v686
      %745 = vmatpush.bf16.msra.mxu0 %v685
      %746 = vmatmul.bf16.gmra.mxu0 %v524
      %v747 = vpop.f32.mrf.mxu0
      %v748 = vadd.f32 %v735, %v747
      %v749 = vpop.f32.mrf.mxu0
      %750 = vdwg.mxu0
      %751 = vmatpush.bf16.msra.mxu0 %v700
      %752 = vmatpush.bf16.msra.mxu0 %v699
      %753 = vmatpush.bf16.msra.mxu0 %v698
      %754 = vmatpush.bf16.msra.mxu0 %v697
      %755 = vmatpush.bf16.msra.mxu0 %v696
      %756 = vmatpush.bf16.msra.mxu0 %v695
      %757 = vmatpush.bf16.msra.mxu0 %v694
      %758 = vmatpush.bf16.msra.mxu0 %v693
      %759 = vmatmul.bf16.gmra.mxu0 %v527
      %v760 = vpop.f32.mrf.mxu0
      %v761 = vadd.f32 %v748, %v760
      %v762 = vpop.f32.mrf.mxu0
      %763 = vdwg.mxu0
      %764 = vst [vmem:[%s391] sm:$0xff] %v761
      %v765 = vrot.slane %v761, 4
      %v766 = vadd.f32 %v761, %v765
      %v767 = vrot.slane %v766, 2
      %v768 = vadd.f32 %v766, %v767
      %v769 = vrot.slane %v768, 1
      %v770 = vadd.f32 %v768, %v769
      %v771 = vmul.f32 %v761, %v761
      %v772 = vrot.slane %v771, 4
      %v773 = vadd.f32 %v771, %v772
      %v774 = vrot.slane %v773, 2
      %v775 = vadd.f32 %v773, %v774
      %v776 = vrot.slane %v775, 1
      %v777 = vadd.f32 %v775, %v776
      %vm778 = vcmask 1040384
      %v779 = vsel %vm778, %v770, %v777
      %780 = vst [vmem:[%s395] sm:$0x3] %v779
      %p781 = scmp.lt.s32.totalorder %s22, 1
      %s782 = scalar_select %p781, %s22, 1
      %s783 = smul.addr %s782, 8
      %s784 = scalar_lea.vmem %s8, %s783
      %p785 = scmp.lt.s32.totalorder %s22, 1
      %s786 = scalar_select %p785, %s22, 1
      %s787 = smul.addr %s786, 8
      %s788 = scalar_lea.vmem %s9, %s787
      %p789 = scmp.lt.s32.totalorder %s22, 1
      %s790 = scalar_select %p789, %s22, 1
      %s791 = smul.addr %s790, 2
      %s792 = scalar_lea.vmem %s10, %s791
      // Predicated region
      $region53: #{res_conv_forward.7} parent=51 // pred_check
        %p793 = pneg %p218
      $region54: #{res_conv_forward.7} parent=51 // pred_check_branch
        %795 = sbr.rel (%p793) target = $region56
      $region55: #{res_conv_forward.7} parent=51 // pred_region
        _
      $region56: #{res_conv_forward.7} parent=51 // pred_fallthru
        _
      // Predicated region
      $region57: #{res_conv_forward.7} parent=51 // pred_check
        %p796 = pneg %p244
      $region58: #{res_conv_forward.7} parent=51 // pred_check_branch
        %798 = sbr.rel (%p796) target = $region60
      $region59: #{res_conv_forward.7} parent=51 // pred_region
        _
      $region60: #{res_conv_forward.7} parent=51 // pred_fallthru
        _
      // Predicated region
      $region61: #{res_conv_forward.7} parent=51 // pred_check
        %p799 = pneg %p270
      $region62: #{res_conv_forward.7} parent=51 // pred_check_branch
        %801 = sbr.rel (%p799) target = $region64
      $region63: #{res_conv_forward.7} parent=51 // pred_region
        _
      $region64: #{res_conv_forward.7} parent=51 // pred_fallthru
        _
    $region52: #{res_conv_forward.7} parent=5 // pred_fallthru
      _
    %p802 = scmp.le.s32.totalorder 2, %s17
    // Predicated region
    $region65: #{res_conv_forward.7} parent=5 // pred_check
      %p803 = pneg %p802
    $region66: #{res_conv_forward.7} parent=5 // pred_check_branch
      %805 = sbr.rel (%p803) target = $region68
    $region67: #{res_conv_forward.7} parent=5 // pred_region
      %s806 = ssub.s32 %s17, 2
      // Predicated region
      $region69: #{res_conv_forward.7} parent=67 // pred_check
        %p807 = pneg %p224
      $region70: #{res_conv_forward.7} parent=67 // pred_check_branch
        %809 = sbr.rel (%p807) target = $region72
      $region71: #{res_conv_forward.7} parent=67 // pred_region
        %p810 = scmp.lt.s32.totalorder %s23, 1
        %s811 = scalar_select %p810, %s23, 1
        %s812 = smul.addr %s811, 8
        %s813 = scalar_lea.vmem %s8, %s812
      $region72: #{res_conv_forward.7} parent=67 // pred_fallthru
        _
      // Predicated region
      $region73: #{res_conv_forward.7} parent=67 // pred_check
        %p814 = pneg %p250
      $region74: #{res_conv_forward.7} parent=67 // pred_check_branch
        %816 = sbr.rel (%p814) target = $region76
      $region75: #{res_conv_forward.7} parent=67 // pred_region
        %p817 = scmp.lt.s32.totalorder %s23, 1
        %s818 = scalar_select %p817, %s23, 1
        %s819 = smul.addr %s818, 8
        %s820 = scalar_lea.vmem %s9, %s819
      $region76: #{res_conv_forward.7} parent=67 // pred_fallthru
        _
      // Predicated region
      $region77: #{res_conv_forward.7} parent=67 // pred_check
        %p821 = pneg %p276
      $region78: #{res_conv_forward.7} parent=67 // pred_check_branch
        %823 = sbr.rel (%p821) target = $region80
      $region79: #{res_conv_forward.7} parent=67 // pred_region
        %p824 = scmp.lt.s32.totalorder %s23, 1
        %s825 = scalar_select %p824, %s23, 1
        %s826 = smul.addr %s825, 2
        %s827 = scalar_lea.vmem %s10, %s826
      $region80: #{res_conv_forward.7} parent=67 // pred_fallthru
        _
    $region68: #{res_conv_forward.7} parent=5 // pred_fallthru
      _
  $region6: #{res_conv_forward.7} parent=0 // loop_footer
    %s21 = sadd.s32 1, %s17
  $region7: #{res_conv_forward.7} parent=0 // loop_footer_branch
    %16 = sbr.rel target = $region3
  $region8: #{res_conv_forward.7} parent=0 // loop_exit
    _

</llo_original>
